<compile_context>
chip_gen: v5e
topology: v5e:2x2
jax: 0.10.0
libtpu: 0.0.40
codegen_flags: <defaults>
</compile_context>

<pallas_src>
import jax
import jax.numpy as jnp
from jax.experimental import pallas as pl
from jax.experimental.pallas import tpu as pltpu

LANE = 128


def dgf_kernel(w_ref, b_ref, f_ref, x_ref, y_ref, z_ref, o_ref):
    # f/x/y/z/o refs: (1, C, tR, 128) VMEM blocks (lane/sublane dense).
    # w_ref: (4*C*C,) f32 in SMEM, layout [gate, c_out, c_in].
    # b_ref: (4*C,)   f32 in SMEM, layout [gate, c_out].
    C = f_ref.shape[1]
    tR = f_ref.shape[2]
    # Rows per compute chunk: one sublane-tile worth for the input dtype.
    pack = max(1, 4 // jnp.dtype(f_ref.dtype).itemsize)
    CH = min(8 * pack, tR)

    def process(r0, rows):
        sl = pl.ds(r0, rows)
        # Load each channel slice once per chunk; reuse across all C outputs.
        fs = [f_ref[0, c, sl, :].astype(jnp.float32) for c in range(C)]
        xs = [x_ref[0, c, sl, :].astype(jnp.float32) for c in range(C)]
        ys = [y_ref[0, c, sl, :].astype(jnp.float32) for c in range(C)]
        zs = [z_ref[0, c, sl, :].astype(jnp.float32) for c in range(C)]

        def gate(chans, g, co):
            # 1x1x1 conv row for output channel `co` of gate `g` (VPU FMAs):
            #   logits = b[g, co] + sum_ci W[g, co, ci] * chans[ci]
            base = (g * C + co) * C
            acc = chans[0] * w_ref[base] + b_ref[g * C + co]
            for ci in range(1, C):
                acc = acc + chans[ci] * w_ref[base + ci]
            # sigmoid(t) == 0.5*tanh(0.5*t) + 0.5 : tanh runs on the EUP slot.
            return 0.5 * jnp.tanh(0.5 * acc) + 0.5

        for co in range(C):
            g_x = gate(xs, 0, co)   # gate1(x)
            g_y = gate(ys, 1, co)   # gate2(y)
            g_z = gate(zs, 2, co)   # gate3(z)
            g_f = gate(fs, 3, co)   # gate4(f)

            xg = xs[co] * g_x
            yg = ys[co] * g_y
            zg = zs[co] * g_z

            x1 = xg + (1.0 - g_x) * (yg + zg)
            y1 = yg + (1.0 - g_y) * (xg + zg)
            z1 = zg + (1.0 - g_z) * (yg + xg)

            out = fs[co] * g_f + (1.0 - g_f) * (x1 + y1 + z1)
            o_ref[0, co, sl, :] = out.astype(o_ref.dtype)

    n_chunks = tR // CH
    if n_chunks == 1:
        process(0, CH)
    else:
        @pl.loop(0, n_chunks)
        def _(i):
            process(pl.multiple_of(i * CH, CH), CH)
    rem = tR - n_chunks * CH
    if rem:
        # Static tail (only when a single block covers a non-multiple-of-CH R).
        process(n_chunks * CH, rem)


def _default_budget():
    """(target_block_bytes, vmem_limit_bytes); shrunk on small-VMEM chips."""
    vmem_cap = None
    try:
        vmem_cap = pltpu.get_tpu_info().vmem_capacity_bytes
    except Exception:
        pass
    if vmem_cap is not None and vmem_cap >= (96 << 20):
        return 2 << 20, 48 << 20      # 128 MiB VMEM chips (v5e / v6e)
    return 1 << 20, 32 << 20          # 64 MiB/TC (v7x) or unknown -> conservative


def dgf_forward(f, x, y, z, weights, biases, *,
                target_block_bytes=None, vmem_limit_bytes=None):
    """f, x, y, z: (N, C, D, H, W). weights: (4, C, C). biases: (4, C)."""
    N, C, D, H, W = f.shape
    S = D * H * W
    R = pl.cdiv(S, LANE)             # 128-lane rows
    S128 = R * LANE
    itemsize = jnp.dtype(f.dtype).itemsize

    if target_block_bytes is None or vmem_limit_bytes is None:
        tb, vl = _default_budget()
        target_block_bytes = target_block_bytes or tb
        vmem_limit_bytes = vmem_limit_bytes or vl

    sub = 8 * max(1, 4 // itemsize)  # sublane tile for this dtype
    tR = max(sub, (target_block_bytes // (C * LANE * itemsize)) // sub * sub)
    if R <= tR:
        tR = R                       # single spatial block (block dim == full dim)
        num_s = 1
    else:
        num_s = pl.cdiv(R, tR)       # Pallas masks the ragged last block

    def prep(a):
        a = a.reshape(N, C, S)       # free reshape (no transpose)
        if S128 != S:                # pad only to the next 128-lane boundary
            a = jnp.pad(a, ((0, 0), (0, 0), (0, S128 - S)))
        return a.reshape(N, C, R, LANE)

    data_spec = pl.BlockSpec((1, C, tR, LANE), lambda n, s: (n, 0, s, 0))
    smem_spec = pl.BlockSpec(memory_space=pltpu.MemorySpace.SMEM)

    w_flat = weights.astype(jnp.float32).reshape(-1)   # [gate, c_out, c_in]
    b_flat = biases.astype(jnp.float32).reshape(-1)    # [gate, c_out]

    cost = pl.CostEstimate(
        flops=int(N * S * C * (8 * C + 20)),
        transcendentals=int(4 * C * N * S),
        bytes_accessed=int(5 * N * C * S * itemsize),
    )

    out = pl.pallas_call(
        dgf_kernel,
        out_shape=jax.ShapeDtypeStruct((N, C, R, LANE), f.dtype),
        grid_spec=pltpu.PrefetchScalarGridSpec(
            num_scalar_prefetch=0,
            grid=(N, num_s),
            in_specs=[smem_spec, smem_spec,
                      data_spec, data_spec, data_spec, data_spec],
            out_specs=data_spec,
        ),
        compiler_params=pltpu.CompilerParams(
            dimension_semantics=("parallel", "parallel"),
            vmem_limit_bytes=vmem_limit_bytes,
        ),
        cost_estimate=cost,
    )(w_flat, b_flat, prep(f), prep(x), prep(y), prep(z))

    out = out.reshape(N, C, S128)
    if S128 != S:
        out = out[:, :, :S]
    return out.reshape(N, C, D, H, W)


def dgf_reference(f, x, y, z, weights, biases):
    """Pure-JAX reference of the PyTorch forward (for correctness check)."""
    def gate(inp, i):
        logits = jnp.einsum("ncdhw,oc->nodhw", inp, weights[i]) \
                 + biases[i][None, :, None, None, None]
        return jax.nn.sigmoid(logits)

    g_x, g_y, g_z, g_f = gate(x, 0), gate(y, 1), gate(z, 2), gate(f, 3)
    x1 = g_x * x + (1 - g_x) * (y * g_y + z * g_z)
    y1 = g_y * y + (1 - g_y) * (x * g_x + z * g_z)
    z1 = g_z * z + (1 - g_z) * (y * g_y + x * g_x)
    return f * g_f + (1 - g_f) * (x1 + y1 + z1)


if __name__ == "__main__":
    # Small shapes: batch=2, in_channel=4, spatial 8x16x16 -> S = 2048 (16 lane
    # rows): exercises the lane-dense layout and the in-kernel chunk loop.
    N, C, D, H, W = 2, 4, 8, 16, 16

    key = jax.random.PRNGKey(0)
    kf, kx, ky, kz, kw, kb = jax.random.split(key, 6)

    f = jax.random.normal(kf, (N, C, D, H, W), dtype=jnp.float32)
    x = jax.random.normal(kx, (N, C, D, H, W), dtype=jnp.float32)
    y = jax.random.normal(ky, (N, C, D, H, W), dtype=jnp.float32)
    z = jax.random.normal(kz, (N, C, D, H, W), dtype=jnp.float32)

    # Synthetic gate parameters (Conv3d k=1 weights squeezed to (C, C)).
    # Order: gate1 (x), gate2 (y), gate3 (z), gate4 (f).
    weights = jax.random.normal(kw, (4, C, C), dtype=jnp.float32) * 0.1
    biases = jax.random.normal(kb, (4, C), dtype=jnp.float32) * 0.1

    out = jax.block_until_ready(dgf_forward(f, x, y, z, weights, biases))

    ref = dgf_reference(f, x, y, z, weights, biases)
    assert out.shape == (N, C, D, H, W)
    assert jnp.allclose(out, ref, atol=1e-4, rtol=1e-4), "mismatch vs reference"

    print("KERNEL_OK")
</pallas_src>

<mosaic_0001>
module attributes {stable_mosaic.version = 11 : i64} {
  func.func @dgf_kernel(%arg0: i32, %arg1: i32, %arg2: memref<64xf32, #tpu.memory_space<smem>>, %arg3: memref<16xf32, #tpu.memory_space<smem>>, %arg4: memref<1x4x16x128xf32, #tpu.memory_space<vmem>>, %arg5: memref<1x4x16x128xf32, #tpu.memory_space<vmem>>, %arg6: memref<1x4x16x128xf32, #tpu.memory_space<vmem>>, %arg7: memref<1x4x16x128xf32, #tpu.memory_space<vmem>>, %arg8: memref<1x4x16x128xf32, #tpu.memory_space<vmem>>) attributes {dimension_semantics = [#tpu.dimension_semantics<parallel>, #tpu.dimension_semantics<parallel>], iteration_bounds = array<i64: 2, 1>, scalar_prefetch = 0 : i64, scratch_operands = 0 : i64, tpu.core_type = #tpu.core_type<tc>, window_params = [{transform_indices = @transform_0, window_bounds = array<i64: 64>}, {transform_indices = @transform_1, window_bounds = array<i64: 16>}, {transform_indices = @transform_2, window_bounds = array<i64: 1, 4, 16, 128>}, {transform_indices = @transform_3, window_bounds = array<i64: 1, 4, 16, 128>}, {transform_indices = @transform_4, window_bounds = array<i64: 1, 4, 16, 128>}, {transform_indices = @transform_5, window_bounds = array<i64: 1, 4, 16, 128>}, {transform_indices = @transform_6, window_bounds = array<i64: 1, 4, 16, 128>}]} {
    %c0_i32 = arith.constant 0 : i32
    %c2_i32 = arith.constant 2 : i32
    %0 = arith.addi %c0_i32, %c2_i32 : i32
    %c1_i32 = arith.constant 1 : i32
    scf.for %arg9 = %c0_i32 to %0 step %c1_i32  : i32 {
      %c1_i32_1 = arith.constant 1 : i32
      %1 = arith.muli %arg9, %c1_i32_1 : i32
      %c0_i32_2 = arith.constant 0 : i32
      %2 = arith.addi %c0_i32_2, %1 : i32
      %c8_i32 = arith.constant 8 : i32
      %3 = arith.muli %2, %c8_i32 : i32
      %4 = tpu.assume_multiple %3, 8 : i32
      %c0 = arith.constant 0 : index
      %c0_3 = arith.constant 0 : index
      %5 = arith.index_cast %4 : i32 to index
      %c0_4 = arith.constant 0 : index
      %6 = vector.load %arg4[%c0, %c0_3, %5, %c0_4] : memref<1x4x16x128xf32, #tpu.memory_space<vmem>>, vector<1x1x8x128xf32>
      %7 = vector.shape_cast %6 : vector<1x1x8x128xf32> to vector<8x128xf32>
      %c0_5 = arith.constant 0 : index
      %c1 = arith.constant 1 : index
      %8 = arith.index_cast %4 : i32 to index
      %c0_6 = arith.constant 0 : index
      %9 = vector.load %arg4[%c0_5, %c1, %8, %c0_6] : memref<1x4x16x128xf32, #tpu.memory_space<vmem>>, vector<1x1x8x128xf32>
      %10 = vector.shape_cast %9 : vector<1x1x8x128xf32> to vector<8x128xf32>
      %c0_7 = arith.constant 0 : index
      %c2 = arith.constant 2 : index
      %11 = arith.index_cast %4 : i32 to index
      %c0_8 = arith.constant 0 : index
      %12 = vector.load %arg4[%c0_7, %c2, %11, %c0_8] : memref<1x4x16x128xf32, #tpu.memory_space<vmem>>, vector<1x1x8x128xf32>
      %13 = vector.shape_cast %12 : vector<1x1x8x128xf32> to vector<8x128xf32>
      %c0_9 = arith.constant 0 : index
      %c3 = arith.constant 3 : index
      %14 = arith.index_cast %4 : i32 to index
      %c0_10 = arith.constant 0 : index
      %15 = vector.load %arg4[%c0_9, %c3, %14, %c0_10] : memref<1x4x16x128xf32, #tpu.memory_space<vmem>>, vector<1x1x8x128xf32>
      %16 = vector.shape_cast %15 : vector<1x1x8x128xf32> to vector<8x128xf32>
      %c0_11 = arith.constant 0 : index
      %c0_12 = arith.constant 0 : index
      %17 = arith.index_cast %4 : i32 to index
      %c0_13 = arith.constant 0 : index
      %18 = vector.load %arg5[%c0_11, %c0_12, %17, %c0_13] : memref<1x4x16x128xf32, #tpu.memory_space<vmem>>, vector<1x1x8x128xf32>
      %19 = vector.shape_cast %18 : vector<1x1x8x128xf32> to vector<8x128xf32>
      %c0_14 = arith.constant 0 : index
      %c1_15 = arith.constant 1 : index
      %20 = arith.index_cast %4 : i32 to index
      %c0_16 = arith.constant 0 : index
      %21 = vector.load %arg5[%c0_14, %c1_15, %20, %c0_16] : memref<1x4x16x128xf32, #tpu.memory_space<vmem>>, vector<1x1x8x128xf32>
      %22 = vector.shape_cast %21 : vector<1x1x8x128xf32> to vector<8x128xf32>
      %c0_17 = arith.constant 0 : index
      %c2_18 = arith.constant 2 : index
      %23 = arith.index_cast %4 : i32 to index
      %c0_19 = arith.constant 0 : index
      %24 = vector.load %arg5[%c0_17, %c2_18, %23, %c0_19] : memref<1x4x16x128xf32, #tpu.memory_space<vmem>>, vector<1x1x8x128xf32>
      %25 = vector.shape_cast %24 : vector<1x1x8x128xf32> to vector<8x128xf32>
      %c0_20 = arith.constant 0 : index
      %c3_21 = arith.constant 3 : index
      %26 = arith.index_cast %4 : i32 to index
      %c0_22 = arith.constant 0 : index
      %27 = vector.load %arg5[%c0_20, %c3_21, %26, %c0_22] : memref<1x4x16x128xf32, #tpu.memory_space<vmem>>, vector<1x1x8x128xf32>
      %28 = vector.shape_cast %27 : vector<1x1x8x128xf32> to vector<8x128xf32>
      %c0_23 = arith.constant 0 : index
      %c0_24 = arith.constant 0 : index
      %29 = arith.index_cast %4 : i32 to index
      %c0_25 = arith.constant 0 : index
      %30 = vector.load %arg6[%c0_23, %c0_24, %29, %c0_25] : memref<1x4x16x128xf32, #tpu.memory_space<vmem>>, vector<1x1x8x128xf32>
      %31 = vector.shape_cast %30 : vector<1x1x8x128xf32> to vector<8x128xf32>
      %c0_26 = arith.constant 0 : index
      %c1_27 = arith.constant 1 : index
      %32 = arith.index_cast %4 : i32 to index
      %c0_28 = arith.constant 0 : index
      %33 = vector.load %arg6[%c0_26, %c1_27, %32, %c0_28] : memref<1x4x16x128xf32, #tpu.memory_space<vmem>>, vector<1x1x8x128xf32>
      %34 = vector.shape_cast %33 : vector<1x1x8x128xf32> to vector<8x128xf32>
      %c0_29 = arith.constant 0 : index
      %c2_30 = arith.constant 2 : index
      %35 = arith.index_cast %4 : i32 to index
      %c0_31 = arith.constant 0 : index
      %36 = vector.load %arg6[%c0_29, %c2_30, %35, %c0_31] : memref<1x4x16x128xf32, #tpu.memory_space<vmem>>, vector<1x1x8x128xf32>
      %37 = vector.shape_cast %36 : vector<1x1x8x128xf32> to vector<8x128xf32>
      %c0_32 = arith.constant 0 : index
      %c3_33 = arith.constant 3 : index
      %38 = arith.index_cast %4 : i32 to index
      %c0_34 = arith.constant 0 : index
      %39 = vector.load %arg6[%c0_32, %c3_33, %38, %c0_34] : memref<1x4x16x128xf32, #tpu.memory_space<vmem>>, vector<1x1x8x128xf32>
      %40 = vector.shape_cast %39 : vector<1x1x8x128xf32> to vector<8x128xf32>
      %c0_35 = arith.constant 0 : index
      %c0_36 = arith.constant 0 : index
      %41 = arith.index_cast %4 : i32 to index
      %c0_37 = arith.constant 0 : index
      %42 = vector.load %arg7[%c0_35, %c0_36, %41, %c0_37] : memref<1x4x16x128xf32, #tpu.memory_space<vmem>>, vector<1x1x8x128xf32>
      %43 = vector.shape_cast %42 : vector<1x1x8x128xf32> to vector<8x128xf32>
      %c0_38 = arith.constant 0 : index
      %c1_39 = arith.constant 1 : index
      %44 = arith.index_cast %4 : i32 to index
      %c0_40 = arith.constant 0 : index
      %45 = vector.load %arg7[%c0_38, %c1_39, %44, %c0_40] : memref<1x4x16x128xf32, #tpu.memory_space<vmem>>, vector<1x1x8x128xf32>
      %46 = vector.shape_cast %45 : vector<1x1x8x128xf32> to vector<8x128xf32>
      %c0_41 = arith.constant 0 : index
      %c2_42 = arith.constant 2 : index
      %47 = arith.index_cast %4 : i32 to index
      %c0_43 = arith.constant 0 : index
      %48 = vector.load %arg7[%c0_41, %c2_42, %47, %c0_43] : memref<1x4x16x128xf32, #tpu.memory_space<vmem>>, vector<1x1x8x128xf32>
      %49 = vector.shape_cast %48 : vector<1x1x8x128xf32> to vector<8x128xf32>
      %c0_44 = arith.constant 0 : index
      %c3_45 = arith.constant 3 : index
      %50 = arith.index_cast %4 : i32 to index
      %c0_46 = arith.constant 0 : index
      %51 = vector.load %arg7[%c0_44, %c3_45, %50, %c0_46] : memref<1x4x16x128xf32, #tpu.memory_space<vmem>>, vector<1x1x8x128xf32>
      %52 = vector.shape_cast %51 : vector<1x1x8x128xf32> to vector<8x128xf32>
      %c0_47 = arith.constant 0 : index
      %53 = memref.load %arg2[%c0_47] : memref<64xf32, #tpu.memory_space<smem>>
      %54 = vector.broadcast %53 : f32 to vector<8x128xf32>
      %55 = arith.mulf %19, %54 : vector<8x128xf32>
      %c0_48 = arith.constant 0 : index
      %56 = memref.load %arg3[%c0_48] : memref<16xf32, #tpu.memory_space<smem>>
      %57 = vector.broadcast %56 : f32 to vector<8x128xf32>
      %58 = arith.addf %55, %57 : vector<8x128xf32>
      %c1_49 = arith.constant 1 : index
      %59 = memref.load %arg2[%c1_49] : memref<64xf32, #tpu.memory_space<smem>>
      %60 = vector.broadcast %59 : f32 to vector<8x128xf32>
      %61 = arith.mulf %22, %60 : vector<8x128xf32>
      %62 = arith.addf %58, %61 : vector<8x128xf32>
      %c2_50 = arith.constant 2 : index
      %63 = memref.load %arg2[%c2_50] : memref<64xf32, #tpu.memory_space<smem>>
      %64 = vector.broadcast %63 : f32 to vector<8x128xf32>
      %65 = arith.mulf %25, %64 : vector<8x128xf32>
      %66 = arith.addf %62, %65 : vector<8x128xf32>
      %c3_51 = arith.constant 3 : index
      %67 = memref.load %arg2[%c3_51] : memref<64xf32, #tpu.memory_space<smem>>
      %68 = vector.broadcast %67 : f32 to vector<8x128xf32>
      %69 = arith.mulf %28, %68 : vector<8x128xf32>
      %70 = arith.addf %66, %69 : vector<8x128xf32>
      %cst = arith.constant 5.000000e-01 : f32
      %71 = vector.broadcast %cst : f32 to vector<8x128xf32>
      %72 = arith.mulf %71, %70 : vector<8x128xf32>
      %73 = math.tanh %72 : vector<8x128xf32>
      %cst_52 = arith.constant 5.000000e-01 : f32
      %74 = vector.broadcast %cst_52 : f32 to vector<8x128xf32>
      %75 = arith.mulf %74, %73 : vector<8x128xf32>
      %cst_53 = arith.constant 5.000000e-01 : f32
      %76 = vector.broadcast %cst_53 : f32 to vector<8x128xf32>
      %77 = arith.addf %75, %76 : vector<8x128xf32>
      %c16 = arith.constant 16 : index
      %78 = memref.load %arg2[%c16] : memref<64xf32, #tpu.memory_space<smem>>
      %79 = vector.broadcast %78 : f32 to vector<8x128xf32>
      %80 = arith.mulf %31, %79 : vector<8x128xf32>
      %c4 = arith.constant 4 : index
      %81 = memref.load %arg3[%c4] : memref<16xf32, #tpu.memory_space<smem>>
      %82 = vector.broadcast %81 : f32 to vector<8x128xf32>
      %83 = arith.addf %80, %82 : vector<8x128xf32>
      %c17 = arith.constant 17 : index
      %84 = memref.load %arg2[%c17] : memref<64xf32, #tpu.memory_space<smem>>
      %85 = vector.broadcast %84 : f32 to vector<8x128xf32>
      %86 = arith.mulf %34, %85 : vector<8x128xf32>
      %87 = arith.addf %83, %86 : vector<8x128xf32>
      %c18 = arith.constant 18 : index
      %88 = memref.load %arg2[%c18] : memref<64xf32, #tpu.memory_space<smem>>
      %89 = vector.broadcast %88 : f32 to vector<8x128xf32>
      %90 = arith.mulf %37, %89 : vector<8x128xf32>
      %91 = arith.addf %87, %90 : vector<8x128xf32>
      %c19 = arith.constant 19 : index
      %92 = memref.load %arg2[%c19] : memref<64xf32, #tpu.memory_space<smem>>
      %93 = vector.broadcast %92 : f32 to vector<8x128xf32>
      %94 = arith.mulf %40, %93 : vector<8x128xf32>
      %95 = arith.addf %91, %94 : vector<8x128xf32>
      %cst_54 = arith.constant 5.000000e-01 : f32
      %96 = vector.broadcast %cst_54 : f32 to vector<8x128xf32>
      %97 = arith.mulf %96, %95 : vector<8x128xf32>
      %98 = math.tanh %97 : vector<8x128xf32>
      %cst_55 = arith.constant 5.000000e-01 : f32
      %99 = vector.broadcast %cst_55 : f32 to vector<8x128xf32>
      %100 = arith.mulf %99, %98 : vector<8x128xf32>
      %cst_56 = arith.constant 5.000000e-01 : f32
      %101 = vector.broadcast %cst_56 : f32 to vector<8x128xf32>
      %102 = arith.addf %100, %101 : vector<8x128xf32>
      %c32 = arith.constant 32 : index
      %103 = memref.load %arg2[%c32] : memref<64xf32, #tpu.memory_space<smem>>
      %104 = vector.broadcast %103 : f32 to vector<8x128xf32>
      %105 = arith.mulf %43, %104 : vector<8x128xf32>
      %c8 = arith.constant 8 : index
      %106 = memref.load %arg3[%c8] : memref<16xf32, #tpu.memory_space<smem>>
      %107 = vector.broadcast %106 : f32 to vector<8x128xf32>
      %108 = arith.addf %105, %107 : vector<8x128xf32>
      %c33 = arith.constant 33 : index
      %109 = memref.load %arg2[%c33] : memref<64xf32, #tpu.memory_space<smem>>
      %110 = vector.broadcast %109 : f32 to vector<8x128xf32>
      %111 = arith.mulf %46, %110 : vector<8x128xf32>
      %112 = arith.addf %108, %111 : vector<8x128xf32>
      %c34 = arith.constant 34 : index
      %113 = memref.load %arg2[%c34] : memref<64xf32, #tpu.memory_space<smem>>
      %114 = vector.broadcast %113 : f32 to vector<8x128xf32>
      %115 = arith.mulf %49, %114 : vector<8x128xf32>
      %116 = arith.addf %112, %115 : vector<8x128xf32>
      %c35 = arith.constant 35 : index
      %117 = memref.load %arg2[%c35] : memref<64xf32, #tpu.memory_space<smem>>
      %118 = vector.broadcast %117 : f32 to vector<8x128xf32>
      %119 = arith.mulf %52, %118 : vector<8x128xf32>
      %120 = arith.addf %116, %119 : vector<8x128xf32>
      %cst_57 = arith.constant 5.000000e-01 : f32
      %121 = vector.broadcast %cst_57 : f32 to vector<8x128xf32>
      %122 = arith.mulf %121, %120 : vector<8x128xf32>
      %123 = math.tanh %122 : vector<8x128xf32>
      %cst_58 = arith.constant 5.000000e-01 : f32
      %124 = vector.broadcast %cst_58 : f32 to vector<8x128xf32>
      %125 = arith.mulf %124, %123 : vector<8x128xf32>
      %cst_59 = arith.constant 5.000000e-01 : f32
      %126 = vector.broadcast %cst_59 : f32 to vector<8x128xf32>
      %127 = arith.addf %125, %126 : vector<8x128xf32>
      %c48 = arith.constant 48 : index
      %128 = memref.load %arg2[%c48] : memref<64xf32, #tpu.memory_space<smem>>
      %129 = vector.broadcast %128 : f32 to vector<8x128xf32>
      %130 = arith.mulf %7, %129 : vector<8x128xf32>
      %c12 = arith.constant 12 : index
      %131 = memref.load %arg3[%c12] : memref<16xf32, #tpu.memory_space<smem>>
      %132 = vector.broadcast %131 : f32 to vector<8x128xf32>
      %133 = arith.addf %130, %132 : vector<8x128xf32>
      %c49 = arith.constant 49 : index
      %134 = memref.load %arg2[%c49] : memref<64xf32, #tpu.memory_space<smem>>
      %135 = vector.broadcast %134 : f32 to vector<8x128xf32>
      %136 = arith.mulf %10, %135 : vector<8x128xf32>
      %137 = arith.addf %133, %136 : vector<8x128xf32>
      %c50 = arith.constant 50 : index
      %138 = memref.load %arg2[%c50] : memref<64xf32, #tpu.memory_space<smem>>
      %139 = vector.broadcast %138 : f32 to vector<8x128xf32>
      %140 = arith.mulf %13, %139 : vector<8x128xf32>
      %141 = arith.addf %137, %140 : vector<8x128xf32>
      %c51 = arith.constant 51 : index
      %142 = memref.load %arg2[%c51] : memref<64xf32, #tpu.memory_space<smem>>
      %143 = vector.broadcast %142 : f32 to vector<8x128xf32>
      %144 = arith.mulf %16, %143 : vector<8x128xf32>
      %145 = arith.addf %141, %144 : vector<8x128xf32>
      %cst_60 = arith.constant 5.000000e-01 : f32
      %146 = vector.broadcast %cst_60 : f32 to vector<8x128xf32>
      %147 = arith.mulf %146, %145 : vector<8x128xf32>
      %148 = math.tanh %147 : vector<8x128xf32>
      %cst_61 = arith.constant 5.000000e-01 : f32
      %149 = vector.broadcast %cst_61 : f32 to vector<8x128xf32>
      %150 = arith.mulf %149, %148 : vector<8x128xf32>
      %cst_62 = arith.constant 5.000000e-01 : f32
      %151 = vector.broadcast %cst_62 : f32 to vector<8x128xf32>
      %152 = arith.addf %150, %151 : vector<8x128xf32>
      %153 = arith.mulf %19, %77 : vector<8x128xf32>
      %154 = arith.mulf %31, %102 : vector<8x128xf32>
      %155 = arith.mulf %43, %127 : vector<8x128xf32>
      %cst_63 = arith.constant 1.000000e+00 : f32
      %156 = vector.broadcast %cst_63 : f32 to vector<8x128xf32>
      %157 = arith.subf %156, %77 : vector<8x128xf32>
      %158 = arith.addf %154, %155 : vector<8x128xf32>
      %159 = arith.mulf %157, %158 : vector<8x128xf32>
      %160 = arith.addf %153, %159 : vector<8x128xf32>
      %cst_64 = arith.constant 1.000000e+00 : f32
      %161 = vector.broadcast %cst_64 : f32 to vector<8x128xf32>
      %162 = arith.subf %161, %102 : vector<8x128xf32>
      %163 = arith.addf %153, %155 : vector<8x128xf32>
      %164 = arith.mulf %162, %163 : vector<8x128xf32>
      %165 = arith.addf %154, %164 : vector<8x128xf32>
      %cst_65 = arith.constant 1.000000e+00 : f32
      %166 = vector.broadcast %cst_65 : f32 to vector<8x128xf32>
      %167 = arith.subf %166, %127 : vector<8x128xf32>
      %168 = arith.addf %154, %153 : vector<8x128xf32>
      %169 = arith.mulf %167, %168 : vector<8x128xf32>
      %170 = arith.addf %155, %169 : vector<8x128xf32>
      %171 = arith.mulf %7, %152 : vector<8x128xf32>
      %cst_66 = arith.constant 1.000000e+00 : f32
      %172 = vector.broadcast %cst_66 : f32 to vector<8x128xf32>
      %173 = arith.subf %172, %152 : vector<8x128xf32>
      %174 = arith.addf %160, %165 : vector<8x128xf32>
      %175 = arith.addf %174, %170 : vector<8x128xf32>
      %176 = arith.mulf %173, %175 : vector<8x128xf32>
      %177 = arith.addf %171, %176 : vector<8x128xf32>
      %c0_67 = arith.constant 0 : index
      %c0_68 = arith.constant 0 : index
      %178 = arith.index_cast %4 : i32 to index
      %c0_69 = arith.constant 0 : index
      %179 = vector.load %arg8[%c0_67, %c0_68, %178, %c0_69] : memref<1x4x16x128xf32, #tpu.memory_space<vmem>>, vector<1x1x8x128xf32>
      %180 = vector.shape_cast %179 : vector<1x1x8x128xf32> to vector<8x128xf32>
      %181 = vector.shape_cast %177 : vector<8x128xf32> to vector<1x1x8x128xf32>
      tpu.vector_store %arg8[%c0_67, %c0_68, %178, %c0_69], %181 {strides = array<i32>} : memref<1x4x16x128xf32, #tpu.memory_space<vmem>>, vector<1x1x8x128xf32>,
      %c4_70 = arith.constant 4 : index
      %182 = memref.load %arg2[%c4_70] : memref<64xf32, #tpu.memory_space<smem>>
      %183 = vector.broadcast %182 : f32 to vector<8x128xf32>
      %184 = arith.mulf %19, %183 : vector<8x128xf32>
      %c1_71 = arith.constant 1 : index
      %185 = memref.load %arg3[%c1_71] : memref<16xf32, #tpu.memory_space<smem>>
      %186 = vector.broadcast %185 : f32 to vector<8x128xf32>
      %187 = arith.addf %184, %186 : vector<8x128xf32>
      %c5 = arith.constant 5 : index
      %188 = memref.load %arg2[%c5] : memref<64xf32, #tpu.memory_space<smem>>
      %189 = vector.broadcast %188 : f32 to vector<8x128xf32>
      %190 = arith.mulf %22, %189 : vector<8x128xf32>
      %191 = arith.addf %187, %190 : vector<8x128xf32>
      %c6 = arith.constant 6 : index
      %192 = memref.load %arg2[%c6] : memref<64xf32, #tpu.memory_space<smem>>
      %193 = vector.broadcast %192 : f32 to vector<8x128xf32>
      %194 = arith.mulf %25, %193 : vector<8x128xf32>
      %195 = arith.addf %191, %194 : vector<8x128xf32>
      %c7 = arith.constant 7 : index
      %196 = memref.load %arg2[%c7] : memref<64xf32, #tpu.memory_space<smem>>
      %197 = vector.broadcast %196 : f32 to vector<8x128xf32>
      %198 = arith.mulf %28, %197 : vector<8x128xf32>
      %199 = arith.addf %195, %198 : vector<8x128xf32>
      %cst_72 = arith.constant 5.000000e-01 : f32
      %200 = vector.broadcast %cst_72 : f32 to vector<8x128xf32>
      %201 = arith.mulf %200, %199 : vector<8x128xf32>
      %202 = math.tanh %201 : vector<8x128xf32>
      %cst_73 = arith.constant 5.000000e-01 : f32
      %203 = vector.broadcast %cst_73 : f32 to vector<8x128xf32>
      %204 = arith.mulf %203, %202 : vector<8x128xf32>
      %cst_74 = arith.constant 5.000000e-01 : f32
      %205 = vector.broadcast %cst_74 : f32 to vector<8x128xf32>
      %206 = arith.addf %204, %205 : vector<8x128xf32>
      %c20 = arith.constant 20 : index
      %207 = memref.load %arg2[%c20] : memref<64xf32, #tpu.memory_space<smem>>
      %208 = vector.broadcast %207 : f32 to vector<8x128xf32>
      %209 = arith.mulf %31, %208 : vector<8x128xf32>
      %c5_75 = arith.constant 5 : index
      %210 = memref.load %arg3[%c5_75] : memref<16xf32, #tpu.memory_space<smem>>
      %211 = vector.broadcast %210 : f32 to vector<8x128xf32>
      %212 = arith.addf %209, %211 : vector<8x128xf32>
      %c21 = arith.constant 21 : index
      %213 = memref.load %arg2[%c21] : memref<64xf32, #tpu.memory_space<smem>>
      %214 = vector.broadcast %213 : f32 to vector<8x128xf32>
      %215 = arith.mulf %34, %214 : vector<8x128xf32>
      %216 = arith.addf %212, %215 : vector<8x128xf32>
      %c22 = arith.constant 22 : index
      %217 = memref.load %arg2[%c22] : memref<64xf32, #tpu.memory_space<smem>>
      %218 = vector.broadcast %217 : f32 to vector<8x128xf32>
      %219 = arith.mulf %37, %218 : vector<8x128xf32>
      %220 = arith.addf %216, %219 : vector<8x128xf32>
      %c23 = arith.constant 23 : index
      %221 = memref.load %arg2[%c23] : memref<64xf32, #tpu.memory_space<smem>>
      %222 = vector.broadcast %221 : f32 to vector<8x128xf32>
      %223 = arith.mulf %40, %222 : vector<8x128xf32>
      %224 = arith.addf %220, %223 : vector<8x128xf32>
      %cst_76 = arith.constant 5.000000e-01 : f32
      %225 = vector.broadcast %cst_76 : f32 to vector<8x128xf32>
      %226 = arith.mulf %225, %224 : vector<8x128xf32>
      %227 = math.tanh %226 : vector<8x128xf32>
      %cst_77 = arith.constant 5.000000e-01 : f32
      %228 = vector.broadcast %cst_77 : f32 to vector<8x128xf32>
      %229 = arith.mulf %228, %227 : vector<8x128xf32>
      %cst_78 = arith.constant 5.000000e-01 : f32
      %230 = vector.broadcast %cst_78 : f32 to vector<8x128xf32>
      %231 = arith.addf %229, %230 : vector<8x128xf32>
      %c36 = arith.constant 36 : index
      %232 = memref.load %arg2[%c36] : memref<64xf32, #tpu.memory_space<smem>>
      %233 = vector.broadcast %232 : f32 to vector<8x128xf32>
      %234 = arith.mulf %43, %233 : vector<8x128xf32>
      %c9 = arith.constant 9 : index
      %235 = memref.load %arg3[%c9] : memref<16xf32, #tpu.memory_space<smem>>
      %236 = vector.broadcast %235 : f32 to vector<8x128xf32>
      %237 = arith.addf %234, %236 : vector<8x128xf32>
      %c37 = arith.constant 37 : index
      %238 = memref.load %arg2[%c37] : memref<64xf32, #tpu.memory_space<smem>>
      %239 = vector.broadcast %238 : f32 to vector<8x128xf32>
      %240 = arith.mulf %46, %239 : vector<8x128xf32>
      %241 = arith.addf %237, %240 : vector<8x128xf32>
      %c38 = arith.constant 38 : index
      %242 = memref.load %arg2[%c38] : memref<64xf32, #tpu.memory_space<smem>>
      %243 = vector.broadcast %242 : f32 to vector<8x128xf32>
      %244 = arith.mulf %49, %243 : vector<8x128xf32>
      %245 = arith.addf %241, %244 : vector<8x128xf32>
      %c39 = arith.constant 39 : index
      %246 = memref.load %arg2[%c39] : memref<64xf32, #tpu.memory_space<smem>>
      %247 = vector.broadcast %246 : f32 to vector<8x128xf32>
      %248 = arith.mulf %52, %247 : vector<8x128xf32>
      %249 = arith.addf %245, %248 : vector<8x128xf32>
      %cst_79 = arith.constant 5.000000e-01 : f32
      %250 = vector.broadcast %cst_79 : f32 to vector<8x128xf32>
      %251 = arith.mulf %250, %249 : vector<8x128xf32>
      %252 = math.tanh %251 : vector<8x128xf32>
      %cst_80 = arith.constant 5.000000e-01 : f32
      %253 = vector.broadcast %cst_80 : f32 to vector<8x128xf32>
      %254 = arith.mulf %253, %252 : vector<8x128xf32>
      %cst_81 = arith.constant 5.000000e-01 : f32
      %255 = vector.broadcast %cst_81 : f32 to vector<8x128xf32>
      %256 = arith.addf %254, %255 : vector<8x128xf32>
      %c52 = arith.constant 52 : index
      %257 = memref.load %arg2[%c52] : memref<64xf32, #tpu.memory_space<smem>>
      %258 = vector.broadcast %257 : f32 to vector<8x128xf32>
      %259 = arith.mulf %7, %258 : vector<8x128xf32>
      %c13 = arith.constant 13 : index
      %260 = memref.load %arg3[%c13] : memref<16xf32, #tpu.memory_space<smem>>
      %261 = vector.broadcast %260 : f32 to vector<8x128xf32>
      %262 = arith.addf %259, %261 : vector<8x128xf32>
      %c53 = arith.constant 53 : index
      %263 = memref.load %arg2[%c53] : memref<64xf32, #tpu.memory_space<smem>>
      %264 = vector.broadcast %263 : f32 to vector<8x128xf32>
      %265 = arith.mulf %10, %264 : vector<8x128xf32>
      %266 = arith.addf %262, %265 : vector<8x128xf32>
      %c54 = arith.constant 54 : index
      %267 = memref.load %arg2[%c54] : memref<64xf32, #tpu.memory_space<smem>>
      %268 = vector.broadcast %267 : f32 to vector<8x128xf32>
      %269 = arith.mulf %13, %268 : vector<8x128xf32>
      %270 = arith.addf %266, %269 : vector<8x128xf32>
      %c55 = arith.constant 55 : index
      %271 = memref.load %arg2[%c55] : memref<64xf32, #tpu.memory_space<smem>>
      %272 = vector.broadcast %271 : f32 to vector<8x128xf32>
      %273 = arith.mulf %16, %272 : vector<8x128xf32>
      %274 = arith.addf %270, %273 : vector<8x128xf32>
      %cst_82 = arith.constant 5.000000e-01 : f32
      %275 = vector.broadcast %cst_82 : f32 to vector<8x128xf32>
      %276 = arith.mulf %275, %274 : vector<8x128xf32>
      %277 = math.tanh %276 : vector<8x128xf32>
      %cst_83 = arith.constant 5.000000e-01 : f32
      %278 = vector.broadcast %cst_83 : f32 to vector<8x128xf32>
      %279 = arith.mulf %278, %277 : vector<8x128xf32>
      %cst_84 = arith.constant 5.000000e-01 : f32
      %280 = vector.broadcast %cst_84 : f32 to vector<8x128xf32>
      %281 = arith.addf %279, %280 : vector<8x128xf32>
      %282 = arith.mulf %22, %206 : vector<8x128xf32>
      %283 = arith.mulf %34, %231 : vector<8x128xf32>
      %284 = arith.mulf %46, %256 : vector<8x128xf32>
      %cst_85 = arith.constant 1.000000e+00 : f32
      %285 = vector.broadcast %cst_85 : f32 to vector<8x128xf32>
      %286 = arith.subf %285, %206 : vector<8x128xf32>
      %287 = arith.addf %283, %284 : vector<8x128xf32>
      %288 = arith.mulf %286, %287 : vector<8x128xf32>
      %289 = arith.addf %282, %288 : vector<8x128xf32>
      %cst_86 = arith.constant 1.000000e+00 : f32
      %290 = vector.broadcast %cst_86 : f32 to vector<8x128xf32>
      %291 = arith.subf %290, %231 : vector<8x128xf32>
      %292 = arith.addf %282, %284 : vector<8x128xf32>
      %293 = arith.mulf %291, %292 : vector<8x128xf32>
      %294 = arith.addf %283, %293 : vector<8x128xf32>
      %cst_87 = arith.constant 1.000000e+00 : f32
      %295 = vector.broadcast %cst_87 : f32 to vector<8x128xf32>
      %296 = arith.subf %295, %256 : vector<8x128xf32>
      %297 = arith.addf %283, %282 : vector<8x128xf32>
      %298 = arith.mulf %296, %297 : vector<8x128xf32>
      %299 = arith.addf %284, %298 : vector<8x128xf32>
      %300 = arith.mulf %10, %281 : vector<8x128xf32>
      %cst_88 = arith.constant 1.000000e+00 : f32
      %301 = vector.broadcast %cst_88 : f32 to vector<8x128xf32>
      %302 = arith.subf %301, %281 : vector<8x128xf32>
      %303 = arith.addf %289, %294 : vector<8x128xf32>
      %304 = arith.addf %303, %299 : vector<8x128xf32>
      %305 = arith.mulf %302, %304 : vector<8x128xf32>
      %306 = arith.addf %300, %305 : vector<8x128xf32>
      %c0_89 = arith.constant 0 : index
      %c1_90 = arith.constant 1 : index
      %307 = arith.index_cast %4 : i32 to index
      %c0_91 = arith.constant 0 : index
      %308 = vector.load %arg8[%c0_89, %c1_90, %307, %c0_91] : memref<1x4x16x128xf32, #tpu.memory_space<vmem>>, vector<1x1x8x128xf32>
      %309 = vector.shape_cast %308 : vector<1x1x8x128xf32> to vector<8x128xf32>
      %310 = vector.shape_cast %306 : vector<8x128xf32> to vector<1x1x8x128xf32>
      tpu.vector_store %arg8[%c0_89, %c1_90, %307, %c0_91], %310 {strides = array<i32>} : memref<1x4x16x128xf32, #tpu.memory_space<vmem>>, vector<1x1x8x128xf32>,
      %c8_92 = arith.constant 8 : index
      %311 = memref.load %arg2[%c8_92] : memref<64xf32, #tpu.memory_space<smem>>
      %312 = vector.broadcast %311 : f32 to vector<8x128xf32>
      %313 = arith.mulf %19, %312 : vector<8x128xf32>
      %c2_93 = arith.constant 2 : index
      %314 = memref.load %arg3[%c2_93] : memref<16xf32, #tpu.memory_space<smem>>
      %315 = vector.broadcast %314 : f32 to vector<8x128xf32>
      %316 = arith.addf %313, %315 : vector<8x128xf32>
      %c9_94 = arith.constant 9 : index
      %317 = memref.load %arg2[%c9_94] : memref<64xf32, #tpu.memory_space<smem>>
      %318 = vector.broadcast %317 : f32 to vector<8x128xf32>
      %319 = arith.mulf %22, %318 : vector<8x128xf32>
      %320 = arith.addf %316, %319 : vector<8x128xf32>
      %c10 = arith.constant 10 : index
      %321 = memref.load %arg2[%c10] : memref<64xf32, #tpu.memory_space<smem>>
      %322 = vector.broadcast %321 : f32 to vector<8x128xf32>
      %323 = arith.mulf %25, %322 : vector<8x128xf32>
      %324 = arith.addf %320, %323 : vector<8x128xf32>
      %c11 = arith.constant 11 : index
      %325 = memref.load %arg2[%c11] : memref<64xf32, #tpu.memory_space<smem>>
      %326 = vector.broadcast %325 : f32 to vector<8x128xf32>
      %327 = arith.mulf %28, %326 : vector<8x128xf32>
      %328 = arith.addf %324, %327 : vector<8x128xf32>
      %cst_95 = arith.constant 5.000000e-01 : f32
      %329 = vector.broadcast %cst_95 : f32 to vector<8x128xf32>
      %330 = arith.mulf %329, %328 : vector<8x128xf32>
      %331 = math.tanh %330 : vector<8x128xf32>
      %cst_96 = arith.constant 5.000000e-01 : f32
      %332 = vector.broadcast %cst_96 : f32 to vector<8x128xf32>
      %333 = arith.mulf %332, %331 : vector<8x128xf32>
      %cst_97 = arith.constant 5.000000e-01 : f32
      %334 = vector.broadcast %cst_97 : f32 to vector<8x128xf32>
      %335 = arith.addf %333, %334 : vector<8x128xf32>
      %c24 = arith.constant 24 : index
      %336 = memref.load %arg2[%c24] : memref<64xf32, #tpu.memory_space<smem>>
      %337 = vector.broadcast %336 : f32 to vector<8x128xf32>
      %338 = arith.mulf %31, %337 : vector<8x128xf32>
      %c6_98 = arith.constant 6 : index
      %339 = memref.load %arg3[%c6_98] : memref<16xf32, #tpu.memory_space<smem>>
      %340 = vector.broadcast %339 : f32 to vector<8x128xf32>
      %341 = arith.addf %338, %340 : vector<8x128xf32>
      %c25 = arith.constant 25 : index
      %342 = memref.load %arg2[%c25] : memref<64xf32, #tpu.memory_space<smem>>
      %343 = vector.broadcast %342 : f32 to vector<8x128xf32>
      %344 = arith.mulf %34, %343 : vector<8x128xf32>
      %345 = arith.addf %341, %344 : vector<8x128xf32>
      %c26 = arith.constant 26 : index
      %346 = memref.load %arg2[%c26] : memref<64xf32, #tpu.memory_space<smem>>
      %347 = vector.broadcast %346 : f32 to vector<8x128xf32>
      %348 = arith.mulf %37, %347 : vector<8x128xf32>
      %349 = arith.addf %345, %348 : vector<8x128xf32>
      %c27 = arith.constant 27 : index
      %350 = memref.load %arg2[%c27] : memref<64xf32, #tpu.memory_space<smem>>
      %351 = vector.broadcast %350 : f32 to vector<8x128xf32>
      %352 = arith.mulf %40, %351 : vector<8x128xf32>
      %353 = arith.addf %349, %352 : vector<8x128xf32>
      %cst_99 = arith.constant 5.000000e-01 : f32
      %354 = vector.broadcast %cst_99 : f32 to vector<8x128xf32>
      %355 = arith.mulf %354, %353 : vector<8x128xf32>
      %356 = math.tanh %355 : vector<8x128xf32>
      %cst_100 = arith.constant 5.000000e-01 : f32
      %357 = vector.broadcast %cst_100 : f32 to vector<8x128xf32>
      %358 = arith.mulf %357, %356 : vector<8x128xf32>
      %cst_101 = arith.constant 5.000000e-01 : f32
      %359 = vector.broadcast %cst_101 : f32 to vector<8x128xf32>
      %360 = arith.addf %358, %359 : vector<8x128xf32>
      %c40 = arith.constant 40 : index
      %361 = memref.load %arg2[%c40] : memref<64xf32, #tpu.memory_space<smem>>
      %362 = vector.broadcast %361 : f32 to vector<8x128xf32>
      %363 = arith.mulf %43, %362 : vector<8x128xf32>
      %c10_102 = arith.constant 10 : index
      %364 = memref.load %arg3[%c10_102] : memref<16xf32, #tpu.memory_space<smem>>
      %365 = vector.broadcast %364 : f32 to vector<8x128xf32>
      %366 = arith.addf %363, %365 : vector<8x128xf32>
      %c41 = arith.constant 41 : index
      %367 = memref.load %arg2[%c41] : memref<64xf32, #tpu.memory_space<smem>>
      %368 = vector.broadcast %367 : f32 to vector<8x128xf32>
      %369 = arith.mulf %46, %368 : vector<8x128xf32>
      %370 = arith.addf %366, %369 : vector<8x128xf32>
      %c42 = arith.constant 42 : index
      %371 = memref.load %arg2[%c42] : memref<64xf32, #tpu.memory_space<smem>>
      %372 = vector.broadcast %371 : f32 to vector<8x128xf32>
      %373 = arith.mulf %49, %372 : vector<8x128xf32>
      %374 = arith.addf %370, %373 : vector<8x128xf32>
      %c43 = arith.constant 43 : index
      %375 = memref.load %arg2[%c43] : memref<64xf32, #tpu.memory_space<smem>>
      %376 = vector.broadcast %375 : f32 to vector<8x128xf32>
      %377 = arith.mulf %52, %376 : vector<8x128xf32>
      %378 = arith.addf %374, %377 : vector<8x128xf32>
      %cst_103 = arith.constant 5.000000e-01 : f32
      %379 = vector.broadcast %cst_103 : f32 to vector<8x128xf32>
      %380 = arith.mulf %379, %378 : vector<8x128xf32>
      %381 = math.tanh %380 : vector<8x128xf32>
      %cst_104 = arith.constant 5.000000e-01 : f32
      %382 = vector.broadcast %cst_104 : f32 to vector<8x128xf32>
      %383 = arith.mulf %382, %381 : vector<8x128xf32>
      %cst_105 = arith.constant 5.000000e-01 : f32
      %384 = vector.broadcast %cst_105 : f32 to vector<8x128xf32>
      %385 = arith.addf %383, %384 : vector<8x128xf32>
      %c56 = arith.constant 56 : index
      %386 = memref.load %arg2[%c56] : memref<64xf32, #tpu.memory_space<smem>>
      %387 = vector.broadcast %386 : f32 to vector<8x128xf32>
      %388 = arith.mulf %7, %387 : vector<8x128xf32>
      %c14 = arith.constant 14 : index
      %389 = memref.load %arg3[%c14] : memref<16xf32, #tpu.memory_space<smem>>
      %390 = vector.broadcast %389 : f32 to vector<8x128xf32>
      %391 = arith.addf %388, %390 : vector<8x128xf32>
      %c57 = arith.constant 57 : index
      %392 = memref.load %arg2[%c57] : memref<64xf32, #tpu.memory_space<smem>>
      %393 = vector.broadcast %392 : f32 to vector<8x128xf32>
      %394 = arith.mulf %10, %393 : vector<8x128xf32>
      %395 = arith.addf %391, %394 : vector<8x128xf32>
      %c58 = arith.constant 58 : index
      %396 = memref.load %arg2[%c58] : memref<64xf32, #tpu.memory_space<smem>>
      %397 = vector.broadcast %396 : f32 to vector<8x128xf32>
      %398 = arith.mulf %13, %397 : vector<8x128xf32>
      %399 = arith.addf %395, %398 : vector<8x128xf32>
      %c59 = arith.constant 59 : index
      %400 = memref.load %arg2[%c59] : memref<64xf32, #tpu.memory_space<smem>>
      %401 = vector.broadcast %400 : f32 to vector<8x128xf32>
      %402 = arith.mulf %16, %401 : vector<8x128xf32>
      %403 = arith.addf %399, %402 : vector<8x128xf32>
      %cst_106 = arith.constant 5.000000e-01 : f32
      %404 = vector.broadcast %cst_106 : f32 to vector<8x128xf32>
      %405 = arith.mulf %404, %403 : vector<8x128xf32>
      %406 = math.tanh %405 : vector<8x128xf32>
      %cst_107 = arith.constant 5.000000e-01 : f32
      %407 = vector.broadcast %cst_107 : f32 to vector<8x128xf32>
      %408 = arith.mulf %407, %406 : vector<8x128xf32>
      %cst_108 = arith.constant 5.000000e-01 : f32
      %409 = vector.broadcast %cst_108 : f32 to vector<8x128xf32>
      %410 = arith.addf %408, %409 : vector<8x128xf32>
      %411 = arith.mulf %25, %335 : vector<8x128xf32>
      %412 = arith.mulf %37, %360 : vector<8x128xf32>
      %413 = arith.mulf %49, %385 : vector<8x128xf32>
      %cst_109 = arith.constant 1.000000e+00 : f32
      %414 = vector.broadcast %cst_109 : f32 to vector<8x128xf32>
      %415 = arith.subf %414, %335 : vector<8x128xf32>
      %416 = arith.addf %412, %413 : vector<8x128xf32>
      %417 = arith.mulf %415, %416 : vector<8x128xf32>
      %418 = arith.addf %411, %417 : vector<8x128xf32>
      %cst_110 = arith.constant 1.000000e+00 : f32
      %419 = vector.broadcast %cst_110 : f32 to vector<8x128xf32>
      %420 = arith.subf %419, %360 : vector<8x128xf32>
      %421 = arith.addf %411, %413 : vector<8x128xf32>
      %422 = arith.mulf %420, %421 : vector<8x128xf32>
      %423 = arith.addf %412, %422 : vector<8x128xf32>
      %cst_111 = arith.constant 1.000000e+00 : f32
      %424 = vector.broadcast %cst_111 : f32 to vector<8x128xf32>
      %425 = arith.subf %424, %385 : vector<8x128xf32>
      %426 = arith.addf %412, %411 : vector<8x128xf32>
      %427 = arith.mulf %425, %426 : vector<8x128xf32>
      %428 = arith.addf %413, %427 : vector<8x128xf32>
      %429 = arith.mulf %13, %410 : vector<8x128xf32>
      %cst_112 = arith.constant 1.000000e+00 : f32
      %430 = vector.broadcast %cst_112 : f32 to vector<8x128xf32>
      %431 = arith.subf %430, %410 : vector<8x128xf32>
      %432 = arith.addf %418, %423 : vector<8x128xf32>
      %433 = arith.addf %432, %428 : vector<8x128xf32>
      %434 = arith.mulf %431, %433 : vector<8x128xf32>
      %435 = arith.addf %429, %434 : vector<8x128xf32>
      %c0_113 = arith.constant 0 : index
      %c2_114 = arith.constant 2 : index
      %436 = arith.index_cast %4 : i32 to index
      %c0_115 = arith.constant 0 : index
      %437 = vector.load %arg8[%c0_113, %c2_114, %436, %c0_115] : memref<1x4x16x128xf32, #tpu.memory_space<vmem>>, vector<1x1x8x128xf32>
      %438 = vector.shape_cast %437 : vector<1x1x8x128xf32> to vector<8x128xf32>
      %439 = vector.shape_cast %435 : vector<8x128xf32> to vector<1x1x8x128xf32>
      tpu.vector_store %arg8[%c0_113, %c2_114, %436, %c0_115], %439 {strides = array<i32>} : memref<1x4x16x128xf32, #tpu.memory_space<vmem>>, vector<1x1x8x128xf32>,
      %c12_116 = arith.constant 12 : index
      %440 = memref.load %arg2[%c12_116] : memref<64xf32, #tpu.memory_space<smem>>
      %441 = vector.broadcast %440 : f32 to vector<8x128xf32>
      %442 = arith.mulf %19, %441 : vector<8x128xf32>
      %c3_117 = arith.constant 3 : index
      %443 = memref.load %arg3[%c3_117] : memref<16xf32, #tpu.memory_space<smem>>
      %444 = vector.broadcast %443 : f32 to vector<8x128xf32>
      %445 = arith.addf %442, %444 : vector<8x128xf32>
      %c13_118 = arith.constant 13 : index
      %446 = memref.load %arg2[%c13_118] : memref<64xf32, #tpu.memory_space<smem>>
      %447 = vector.broadcast %446 : f32 to vector<8x128xf32>
      %448 = arith.mulf %22, %447 : vector<8x128xf32>
      %449 = arith.addf %445, %448 : vector<8x128xf32>
      %c14_119 = arith.constant 14 : index
      %450 = memref.load %arg2[%c14_119] : memref<64xf32, #tpu.memory_space<smem>>
      %451 = vector.broadcast %450 : f32 to vector<8x128xf32>
      %452 = arith.mulf %25, %451 : vector<8x128xf32>
      %453 = arith.addf %449, %452 : vector<8x128xf32>
      %c15 = arith.constant 15 : index
      %454 = memref.load %arg2[%c15] : memref<64xf32, #tpu.memory_space<smem>>
      %455 = vector.broadcast %454 : f32 to vector<8x128xf32>
      %456 = arith.mulf %28, %455 : vector<8x128xf32>
      %457 = arith.addf %453, %456 : vector<8x128xf32>
      %cst_120 = arith.constant 5.000000e-01 : f32
      %458 = vector.broadcast %cst_120 : f32 to vector<8x128xf32>
      %459 = arith.mulf %458, %457 : vector<8x128xf32>
      %460 = math.tanh %459 : vector<8x128xf32>
      %cst_121 = arith.constant 5.000000e-01 : f32
      %461 = vector.broadcast %cst_121 : f32 to vector<8x128xf32>
      %462 = arith.mulf %461, %460 : vector<8x128xf32>
      %cst_122 = arith.constant 5.000000e-01 : f32
      %463 = vector.broadcast %cst_122 : f32 to vector<8x128xf32>
      %464 = arith.addf %462, %463 : vector<8x128xf32>
      %c28 = arith.constant 28 : index
      %465 = memref.load %arg2[%c28] : memref<64xf32, #tpu.memory_space<smem>>
      %466 = vector.broadcast %465 : f32 to vector<8x128xf32>
      %467 = arith.mulf %31, %466 : vector<8x128xf32>
      %c7_123 = arith.constant 7 : index
      %468 = memref.load %arg3[%c7_123] : memref<16xf32, #tpu.memory_space<smem>>
      %469 = vector.broadcast %468 : f32 to vector<8x128xf32>
      %470 = arith.addf %467, %469 : vector<8x128xf32>
      %c29 = arith.constant 29 : index
      %471 = memref.load %arg2[%c29] : memref<64xf32, #tpu.memory_space<smem>>
      %472 = vector.broadcast %471 : f32 to vector<8x128xf32>
      %473 = arith.mulf %34, %472 : vector<8x128xf32>
      %474 = arith.addf %470, %473 : vector<8x128xf32>
      %c30 = arith.constant 30 : index
      %475 = memref.load %arg2[%c30] : memref<64xf32, #tpu.memory_space<smem>>
      %476 = vector.broadcast %475 : f32 to vector<8x128xf32>
      %477 = arith.mulf %37, %476 : vector<8x128xf32>
      %478 = arith.addf %474, %477 : vector<8x128xf32>
      %c31 = arith.constant 31 : index
      %479 = memref.load %arg2[%c31] : memref<64xf32, #tpu.memory_space<smem>>
      %480 = vector.broadcast %479 : f32 to vector<8x128xf32>
      %481 = arith.mulf %40, %480 : vector<8x128xf32>
      %482 = arith.addf %478, %481 : vector<8x128xf32>
      %cst_124 = arith.constant 5.000000e-01 : f32
      %483 = vector.broadcast %cst_124 : f32 to vector<8x128xf32>
      %484 = arith.mulf %483, %482 : vector<8x128xf32>
      %485 = math.tanh %484 : vector<8x128xf32>
      %cst_125 = arith.constant 5.000000e-01 : f32
      %486 = vector.broadcast %cst_125 : f32 to vector<8x128xf32>
      %487 = arith.mulf %486, %485 : vector<8x128xf32>
      %cst_126 = arith.constant 5.000000e-01 : f32
      %488 = vector.broadcast %cst_126 : f32 to vector<8x128xf32>
      %489 = arith.addf %487, %488 : vector<8x128xf32>
      %c44 = arith.constant 44 : index
      %490 = memref.load %arg2[%c44] : memref<64xf32, #tpu.memory_space<smem>>
      %491 = vector.broadcast %490 : f32 to vector<8x128xf32>
      %492 = arith.mulf %43, %491 : vector<8x128xf32>
      %c11_127 = arith.constant 11 : index
      %493 = memref.load %arg3[%c11_127] : memref<16xf32, #tpu.memory_space<smem>>
      %494 = vector.broadcast %493 : f32 to vector<8x128xf32>
      %495 = arith.addf %492, %494 : vector<8x128xf32>
      %c45 = arith.constant 45 : index
      %496 = memref.load %arg2[%c45] : memref<64xf32, #tpu.memory_space<smem>>
      %497 = vector.broadcast %496 : f32 to vector<8x128xf32>
      %498 = arith.mulf %46, %497 : vector<8x128xf32>
      %499 = arith.addf %495, %498 : vector<8x128xf32>
      %c46 = arith.constant 46 : index
      %500 = memref.load %arg2[%c46] : memref<64xf32, #tpu.memory_space<smem>>
      %501 = vector.broadcast %500 : f32 to vector<8x128xf32>
      %502 = arith.mulf %49, %501 : vector<8x128xf32>
      %503 = arith.addf %499, %502 : vector<8x128xf32>
      %c47 = arith.constant 47 : index
      %504 = memref.load %arg2[%c47] : memref<64xf32, #tpu.memory_space<smem>>
      %505 = vector.broadcast %504 : f32 to vector<8x128xf32>
      %506 = arith.mulf %52, %505 : vector<8x128xf32>
      %507 = arith.addf %503, %506 : vector<8x128xf32>
      %cst_128 = arith.constant 5.000000e-01 : f32
      %508 = vector.broadcast %cst_128 : f32 to vector<8x128xf32>
      %509 = arith.mulf %508, %507 : vector<8x128xf32>
      %510 = math.tanh %509 : vector<8x128xf32>
      %cst_129 = arith.constant 5.000000e-01 : f32
      %511 = vector.broadcast %cst_129 : f32 to vector<8x128xf32>
      %512 = arith.mulf %511, %510 : vector<8x128xf32>
      %cst_130 = arith.constant 5.000000e-01 : f32
      %513 = vector.broadcast %cst_130 : f32 to vector<8x128xf32>
      %514 = arith.addf %512, %513 : vector<8x128xf32>
      %c60 = arith.constant 60 : index
      %515 = memref.load %arg2[%c60] : memref<64xf32, #tpu.memory_space<smem>>
      %516 = vector.broadcast %515 : f32 to vector<8x128xf32>
      %517 = arith.mulf %7, %516 : vector<8x128xf32>
      %c15_131 = arith.constant 15 : index
      %518 = memref.load %arg3[%c15_131] : memref<16xf32, #tpu.memory_space<smem>>
      %519 = vector.broadcast %518 : f32 to vector<8x128xf32>
      %520 = arith.addf %517, %519 : vector<8x128xf32>
      %c61 = arith.constant 61 : index
      %521 = memref.load %arg2[%c61] : memref<64xf32, #tpu.memory_space<smem>>
      %522 = vector.broadcast %521 : f32 to vector<8x128xf32>
      %523 = arith.mulf %10, %522 : vector<8x128xf32>
      %524 = arith.addf %520, %523 : vector<8x128xf32>
      %c62 = arith.constant 62 : index
      %525 = memref.load %arg2[%c62] : memref<64xf32, #tpu.memory_space<smem>>
      %526 = vector.broadcast %525 : f32 to vector<8x128xf32>
      %527 = arith.mulf %13, %526 : vector<8x128xf32>
      %528 = arith.addf %524, %527 : vector<8x128xf32>
      %c63 = arith.constant 63 : index
      %529 = memref.load %arg2[%c63] : memref<64xf32, #tpu.memory_space<smem>>
      %530 = vector.broadcast %529 : f32 to vector<8x128xf32>
      %531 = arith.mulf %16, %530 : vector<8x128xf32>
      %532 = arith.addf %528, %531 : vector<8x128xf32>
      %cst_132 = arith.constant 5.000000e-01 : f32
      %533 = vector.broadcast %cst_132 : f32 to vector<8x128xf32>
      %534 = arith.mulf %533, %532 : vector<8x128xf32>
      %535 = math.tanh %534 : vector<8x128xf32>
      %cst_133 = arith.constant 5.000000e-01 : f32
      %536 = vector.broadcast %cst_133 : f32 to vector<8x128xf32>
      %537 = arith.mulf %536, %535 : vector<8x128xf32>
      %cst_134 = arith.constant 5.000000e-01 : f32
      %538 = vector.broadcast %cst_134 : f32 to vector<8x128xf32>
      %539 = arith.addf %537, %538 : vector<8x128xf32>
      %540 = arith.mulf %28, %464 : vector<8x128xf32>
      %541 = arith.mulf %40, %489 : vector<8x128xf32>
      %542 = arith.mulf %52, %514 : vector<8x128xf32>
      %cst_135 = arith.constant 1.000000e+00 : f32
      %543 = vector.broadcast %cst_135 : f32 to vector<8x128xf32>
      %544 = arith.subf %543, %464 : vector<8x128xf32>
      %545 = arith.addf %541, %542 : vector<8x128xf32>
      %546 = arith.mulf %544, %545 : vector<8x128xf32>
      %547 = arith.addf %540, %546 : vector<8x128xf32>
      %cst_136 = arith.constant 1.000000e+00 : f32
      %548 = vector.broadcast %cst_136 : f32 to vector<8x128xf32>
      %549 = arith.subf %548, %489 : vector<8x128xf32>
      %550 = arith.addf %540, %542 : vector<8x128xf32>
      %551 = arith.mulf %549, %550 : vector<8x128xf32>
      %552 = arith.addf %541, %551 : vector<8x128xf32>
      %cst_137 = arith.constant 1.000000e+00 : f32
      %553 = vector.broadcast %cst_137 : f32 to vector<8x128xf32>
      %554 = arith.subf %553, %514 : vector<8x128xf32>
      %555 = arith.addf %541, %540 : vector<8x128xf32>
      %556 = arith.mulf %554, %555 : vector<8x128xf32>
      %557 = arith.addf %542, %556 : vector<8x128xf32>
      %558 = arith.mulf %16, %539 : vector<8x128xf32>
      %cst_138 = arith.constant 1.000000e+00 : f32
      %559 = vector.broadcast %cst_138 : f32 to vector<8x128xf32>
      %560 = arith.subf %559, %539 : vector<8x128xf32>
      %561 = arith.addf %547, %552 : vector<8x128xf32>
      %562 = arith.addf %561, %557 : vector<8x128xf32>
      %563 = arith.mulf %560, %562 : vector<8x128xf32>
      %564 = arith.addf %558, %563 : vector<8x128xf32>
      %c0_139 = arith.constant 0 : index
      %c3_140 = arith.constant 3 : index
      %565 = arith.index_cast %4 : i32 to index
      %c0_141 = arith.constant 0 : index
      %566 = vector.load %arg8[%c0_139, %c3_140, %565, %c0_141] : memref<1x4x16x128xf32, #tpu.memory_space<vmem>>, vector<1x1x8x128xf32>
      %567 = vector.shape_cast %566 : vector<1x1x8x128xf32> to vector<8x128xf32>
      %568 = vector.shape_cast %564 : vector<8x128xf32> to vector<1x1x8x128xf32>
      tpu.vector_store %arg8[%c0_139, %c3_140, %565, %c0_141], %568 {strides = array<i32>} : memref<1x4x16x128xf32, #tpu.memory_space<vmem>>, vector<1x1x8x128xf32>,
    }
    %c2_i32_0 = arith.constant 2 : i32
    return
  }
  func.func @transform_0(%arg0: i32, %arg1: i32) -> i32 {
    %c0_i32 = arith.constant 0 : i32
    %c0_i32_0 = arith.constant 0 : i32
    return %c0_i32 : i32
  }
  func.func @transform_1(%arg0: i32, %arg1: i32) -> i32 {
    %c0_i32 = arith.constant 0 : i32
    %c0_i32_0 = arith.constant 0 : i32
    return %c0_i32 : i32
  }
  func.func @transform_2(%arg0: i32, %arg1: i32) -> (i32, i32, i32, i32) {
    %c0_i32 = arith.constant 0 : i32
    %c0_i32_0 = arith.constant 0 : i32
    %c0_i32_1 = arith.constant 0 : i32
    return %arg0, %c0_i32, %arg1, %c0_i32_0 : i32, i32, i32, i32
  }
  func.func @transform_3(%arg0: i32, %arg1: i32) -> (i32, i32, i32, i32) {
    %c0_i32 = arith.constant 0 : i32
    %c0_i32_0 = arith.constant 0 : i32
    %c0_i32_1 = arith.constant 0 : i32
    return %arg0, %c0_i32, %arg1, %c0_i32_0 : i32, i32, i32, i32
  }
  func.func @transform_4(%arg0: i32, %arg1: i32) -> (i32, i32, i32, i32) {
    %c0_i32 = arith.constant 0 : i32
    %c0_i32_0 = arith.constant 0 : i32
    %c0_i32_1 = arith.constant 0 : i32
    return %arg0, %c0_i32, %arg1, %c0_i32_0 : i32, i32, i32, i32
  }
  func.func @transform_5(%arg0: i32, %arg1: i32) -> (i32, i32, i32, i32) {
    %c0_i32 = arith.constant 0 : i32
    %c0_i32_0 = arith.constant 0 : i32
    %c0_i32_1 = arith.constant 0 : i32
    return %arg0, %c0_i32, %arg1, %c0_i32_0 : i32, i32, i32, i32
  }
  func.func @transform_6(%arg0: i32, %arg1: i32) -> (i32, i32, i32, i32) {
    %c0_i32 = arith.constant 0 : i32
    %c0_i32_0 = arith.constant 0 : i32
    %c0_i32_1 = arith.constant 0 : i32
    return %arg0, %c0_i32, %arg1, %c0_i32_0 : i32, i32, i32, i32
  }
}

</mosaic_0001>

<llo_original>
// kernel: tpu_custom_call.1
$region0: #{tpu_custom_call.1}
  #allocation0 [shape = 'u32[]', space=smem, size = 0x4, offset = 0x4, fixed_abs, tag = 'smem constant byte address 0x4 - core index']
  #allocation1 [shape = 'u32[72,128]{1,0:T(1,128)}', space=vmem, size = 0x9000, scoped, tag = 'internal scratch']
  %s0 = inlined_call_operand.hbm [shape: f32[64], index: 0, kind: input, shape index: {}]
  %s1 = inlined_call_operand.hbm [shape: f32[16], index: 1, kind: input, shape index: {}]
  %s2 = inlined_call_operand.hbm [shape: f32[2,4,16,128], index: 2, kind: input, shape index: {}]
  %s3 = inlined_call_operand.hbm [shape: f32[2,4,16,128], index: 3, kind: input, shape index: {}]
  %s4 = inlined_call_operand.hbm [shape: f32[2,4,16,128], index: 4, kind: input, shape index: {}]
  %s5 = inlined_call_operand.hbm [shape: f32[2,4,16,128], index: 5, kind: input, shape index: {}]
  %s6 = inlined_call_operand.hbm [shape: f32[2,4,16,128], index: 6, kind: output, shape index: {}]
  %s7 = sld [smem:[#allocation0]]
  $region88: #{tpu_custom_call.1} parent=0
    _
  %s9 = ssub.s32 1, %s7
  %s10 = scalar_select 0, %s9, %s7
  $region1: #{tpu_custom_call.1} parent=0
    #allocation2 [shape = 'u8[512]{0}', space=smem, size = 0x200, scoped, tag = 'input window, operand 0, single buffered']
    #allocation3 [shape = 's32[2]{0}', space=sflag, size = 0x8, scoped, tag = 'scoped memory for tpu_custom_call.1']
    #allocation4 [shape = 's32[2]{0}', space=sflag, size = 0x8, scoped, tag = 'scoped memory for tpu_custom_call.1']
    #allocation5 [shape = 's32[2]{0}', space=sflag, size = 0x8, scoped, tag = 'scoped memory for tpu_custom_call.1']
    #allocation6 [shape = 'u8[512]{0}', space=smem, size = 0x200, scoped, tag = 'input window, operand 1, single buffered']
    #allocation7 [shape = 's32[1]{0}', space=sflag, size = 0x4, scoped, tag = 'scoped memory for tpu_custom_call.1']
    #allocation8 [shape = 'u8[65536]{0}', space=vmem, size = 0x10000, scoped, tag = 'input window, operand 2']
    #allocation9 [shape = 'u8[65536]{0}', space=vmem, size = 0x10000, scoped, tag = 'input window, operand 3']
    #allocation10 [shape = 's32[2]{0}', space=sflag, size = 0x8, scoped, tag = 'scoped memory for tpu_custom_call.1']
    #allocation11 [shape = 'u8[65536]{0}', space=vmem, size = 0x10000, scoped, tag = 'input window, operand 4']
    #allocation12 [shape = 'u8[65536]{0}', space=vmem, size = 0x10000, scoped, tag = 'input window, operand 5']
    #allocation13 [shape = 's32[2]{0}', space=sflag, size = 0x8, scoped, tag = 'scoped memory for tpu_custom_call.1']
    #allocation14 [shape = 'u8[65536]{0}', space=vmem, size = 0x10000, scoped, tag = 'output window, operand 0']
    %11 = vsyncpa [#allocation5], 0
    %12 = vsyncpa [#allocation7], 0
    %13 = vsyncpa [#allocation3], 0
    %s14 = scalar_lea.sflag [#allocation3], 1
    %15 = vsyncpa %s14, 0
    %16 = vsyncpa [#allocation10], 0
    %s17 = scalar_lea.sflag [#allocation10], 1
    %18 = vsyncpa %s17, 0
    %19 = vsyncpa [#allocation13], 0
    %s20 = scalar_lea.sflag [#allocation13], 1
    %21 = vsyncpa %s20, 0
    %22 = vsyncpa [#allocation4], 0
    %s23 = scalar_lea.sflag [#allocation4], 1
    %24 = vsyncpa %s23, 0
    loop: start=0, step=1, limit=4
    $region2: #{tpu_custom_call.1} parent=1 // loop_pre_header
      _
    $region3: #{tpu_custom_call.1} parent=1 // loop_header
      %s26 = sphi 0, %s30
      %p27 = scmp.ge.s32.totalorder %s26, 4
      %s33 = sphi 0, %s45
      %s34 = sphi 0, %s41
      %s35 = sphi 0, %s33
      %s36 = sphi 0, %s34
      %s37 = sphi 0, %s35
      %s38 = sphi 0, %s36
      %s46 = sphi 0, %s46
      %s48 = sphi 0, %s46
      %s49 = sphi 0, %s48
      %s63 = sphi 0, %s49
      %s67 = sphi 0, %s67
      %s69 = sphi 0, %s67
      %s70 = sphi 0, %s69
      %s84 = sphi 0, %s70
      %s92 = sphi 0, %s94
      %s95 = sphi 0, %s92
      %s96 = sphi 0, %s95
      %s112 = sphi 0, %s96
      %s120 = sphi 0, %s122
      %s123 = sphi 0, %s120
      %s124 = sphi 0, %s123
      %s140 = sphi 0, %s124
      %s148 = sphi 0, %s150
      %s151 = sphi 0, %s148
      %s152 = sphi 0, %s151
      %s168 = sphi 0, %s152
      %s176 = sphi 0, %s178
      %s179 = sphi 0, %s176
      %s180 = sphi 0, %s179
      %s196 = sphi 0, %s180
      %s204 = sphi 0, %s206
      %s207 = sphi 0, %s204
      %s208 = sphi 0, %s207
      %s224 = sphi 0, %s208
    $region4: #{tpu_custom_call.1} parent=1 // loop_header_branch
      %29 = sbr.rel (%p27) target = $region8
    $region5: #{tpu_custom_call.1} parent=1 // loop_body
      %s31 = ssub.s32 %s26, 1
      %s32 = ssub.s32 %s26, 2
      %s39 = sadd.s32 1, %s34
      %p40 = scmp.ge.s32.totalorder %s39, 1
      %s41 = scalar_select %p40, 0, %s39
      %s42 = sadd.s32 1, %s33
      %s43 = scalar_select %p40, %s42, %s33
      %p44 = scmp.ge.s32.totalorder %s43, 2
      %s45 = scalar_select %p44, 0, %s43
      %s47 = sadd.s32 %s46, 1
      %p50 = scmp.eq.s32.totalorder %s26, 1
      %p51 = scmp.ne.s32.totalorder %s46, %s48
      %p52 = scmp.eq.s32.totalorder %s26, 0
      %p53 = por %p51, %p52
      %p54 = scmp.ne.s32.totalorder %s46, %s48
      %p55 = scmp.eq.s32.totalorder %s31, 1
      %p56 = por %p54, %p55
      %p57 = scmp.ne.s32.totalorder %s48, %s49
      %p58 = scmp.eq.s32.totalorder %s31, 0
      %p59 = por %p57, %p58
      %p60 = scmp.ne.s32.totalorder %s48, %s49
      %p61 = scmp.eq.s32.totalorder %s32, 1
      %p62 = por %p60, %p61
      %p64 = scmp.ne.s32.totalorder %s49, %s63
      %p65 = scmp.eq.s32.totalorder %s32, 0
      %p66 = por %p64, %p65
      %s68 = sadd.s32 %s67, 1
      %p71 = scmp.eq.s32.totalorder %s26, 1
      %p72 = scmp.ne.s32.totalorder %s67, %s69
      %p73 = scmp.eq.s32.totalorder %s26, 0
      %p74 = por %p72, %p73
      %p75 = scmp.ne.s32.totalorder %s67, %s69
      %p76 = scmp.eq.s32.totalorder %s31, 1
      %p77 = por %p75, %p76
      %p78 = scmp.ne.s32.totalorder %s69, %s70
      %p79 = scmp.eq.s32.totalorder %s31, 0
      %p80 = por %p78, %p79
      %p81 = scmp.ne.s32.totalorder %s69, %s70
      %p82 = scmp.eq.s32.totalorder %s32, 1
      %p83 = por %p81, %p82
      %p85 = scmp.ne.s32.totalorder %s70, %s84
      %p86 = scmp.eq.s32.totalorder %s32, 0
      %p87 = por %p85, %p86
      %s88 = ssub.s32 %s33, %s45
      %s89 = ssub.s32 %s34, %s41
      %s90 = sor.u32 %s88, %s89
      %p91 = scmp.eq.s32.totalorder %s90, 0
      %s93 = sadd.s32 %s92, 1
      %s94 = scalar_select %p91, %s92, %s93
      %p97 = pneg %p91
      %p98 = scmp.eq.s32.totalorder %s26, 1
      %p99 = por %p97, %p98
      %p100 = scmp.ne.s32.totalorder %s92, %s95
      %p101 = scmp.eq.s32.totalorder %s26, 0
      %p102 = por %p100, %p101
      %p103 = scmp.ne.s32.totalorder %s92, %s95
      %p104 = scmp.eq.s32.totalorder %s31, 1
      %p105 = por %p103, %p104
      %p106 = scmp.ne.s32.totalorder %s95, %s96
      %p107 = scmp.eq.s32.totalorder %s31, 0
      %p108 = por %p106, %p107
      %p109 = scmp.ne.s32.totalorder %s95, %s96
      %p110 = scmp.eq.s32.totalorder %s32, 1
      %p111 = por %p109, %p110
      %p113 = scmp.ne.s32.totalorder %s96, %s112
      %p114 = scmp.eq.s32.totalorder %s32, 0
      %p115 = por %p113, %p114
      %s116 = ssub.s32 %s33, %s45
      %s117 = ssub.s32 %s34, %s41
      %s118 = sor.u32 %s116, %s117
      %p119 = scmp.eq.s32.totalorder %s118, 0
      %s121 = sadd.s32 %s120, 1
      %s122 = scalar_select %p119, %s120, %s121
      %p125 = pneg %p119
      %p126 = scmp.eq.s32.totalorder %s26, 1
      %p127 = por %p125, %p126
      %p128 = scmp.ne.s32.totalorder %s120, %s123
      %p129 = scmp.eq.s32.totalorder %s26, 0
      %p130 = por %p128, %p129
      %p131 = scmp.ne.s32.totalorder %s120, %s123
      %p132 = scmp.eq.s32.totalorder %s31, 1
      %p133 = por %p131, %p132
      %p134 = scmp.ne.s32.totalorder %s123, %s124
      %p135 = scmp.eq.s32.totalorder %s31, 0
      %p136 = por %p134, %p135
      %p137 = scmp.ne.s32.totalorder %s123, %s124
      %p138 = scmp.eq.s32.totalorder %s32, 1
      %p139 = por %p137, %p138
      %p141 = scmp.ne.s32.totalorder %s124, %s140
      %p142 = scmp.eq.s32.totalorder %s32, 0
      %p143 = por %p141, %p142
      %s144 = ssub.s32 %s33, %s45
      %s145 = ssub.s32 %s34, %s41
      %s146 = sor.u32 %s144, %s145
      %p147 = scmp.eq.s32.totalorder %s146, 0
      %s149 = sadd.s32 %s148, 1
      %s150 = scalar_select %p147, %s148, %s149
      %p153 = pneg %p147
      %p154 = scmp.eq.s32.totalorder %s26, 1
      %p155 = por %p153, %p154
      %p156 = scmp.ne.s32.totalorder %s148, %s151
      %p157 = scmp.eq.s32.totalorder %s26, 0
      %p158 = por %p156, %p157
      %p159 = scmp.ne.s32.totalorder %s148, %s151
      %p160 = scmp.eq.s32.totalorder %s31, 1
      %p161 = por %p159, %p160
      %p162 = scmp.ne.s32.totalorder %s151, %s152
      %p163 = scmp.eq.s32.totalorder %s31, 0
      %p164 = por %p162, %p163
      %p165 = scmp.ne.s32.totalorder %s151, %s152
      %p166 = scmp.eq.s32.totalorder %s32, 1
      %p167 = por %p165, %p166
      %p169 = scmp.ne.s32.totalorder %s152, %s168
      %p170 = scmp.eq.s32.totalorder %s32, 0
      %p171 = por %p169, %p170
      %s172 = ssub.s32 %s33, %s45
      %s173 = ssub.s32 %s34, %s41
      %s174 = sor.u32 %s172, %s173
      %p175 = scmp.eq.s32.totalorder %s174, 0
      %s177 = sadd.s32 %s176, 1
      %s178 = scalar_select %p175, %s176, %s177
      %p181 = pneg %p175
      %p182 = scmp.eq.s32.totalorder %s26, 1
      %p183 = por %p181, %p182
      %p184 = scmp.ne.s32.totalorder %s176, %s179
      %p185 = scmp.eq.s32.totalorder %s26, 0
      %p186 = por %p184, %p185
      %p187 = scmp.ne.s32.totalorder %s176, %s179
      %p188 = scmp.eq.s32.totalorder %s31, 1
      %p189 = por %p187, %p188
      %p190 = scmp.ne.s32.totalorder %s179, %s180
      %p191 = scmp.eq.s32.totalorder %s31, 0
      %p192 = por %p190, %p191
      %p193 = scmp.ne.s32.totalorder %s179, %s180
      %p194 = scmp.eq.s32.totalorder %s32, 1
      %p195 = por %p193, %p194
      %p197 = scmp.ne.s32.totalorder %s180, %s196
      %p198 = scmp.eq.s32.totalorder %s32, 0
      %p199 = por %p197, %p198
      %s200 = ssub.s32 %s33, %s45
      %s201 = ssub.s32 %s34, %s41
      %s202 = sor.u32 %s200, %s201
      %p203 = scmp.eq.s32.totalorder %s202, 0
      %s205 = sadd.s32 %s204, 1
      %s206 = scalar_select %p203, %s204, %s205
      %p209 = pneg %p203
      %p210 = scmp.eq.s32.totalorder %s26, 1
      %p211 = por %p209, %p210
      %p212 = scmp.ne.s32.totalorder %s204, %s207
      %p213 = scmp.eq.s32.totalorder %s26, 0
      %p214 = por %p212, %p213
      %p215 = scmp.ne.s32.totalorder %s204, %s207
      %p216 = scmp.eq.s32.totalorder %s31, 1
      %p217 = por %p215, %p216
      %p218 = scmp.ne.s32.totalorder %s207, %s208
      %p219 = scmp.eq.s32.totalorder %s31, 0
      %p220 = por %p218, %p219
      %p221 = scmp.ne.s32.totalorder %s207, %s208
      %p222 = scmp.eq.s32.totalorder %s32, 1
      %p223 = por %p221, %p222
      %p225 = scmp.ne.s32.totalorder %s208, %s224
      %p226 = scmp.eq.s32.totalorder %s32, 0
      %p227 = por %p225, %p226
      %p228 = scmp.le.s32.totalorder 1, %s26
      %p229 = scmp.lt.s32.totalorder %s26, 3
      %p230 = pnand %p228, %p229
      %p231 = pneg %p230
      // Predicated region
      $region9: #{tpu_custom_call.1} parent=5 // pred_check
        _
      $region10: #{tpu_custom_call.1} parent=5 // pred_check_branch
        %233 = sbr.rel (%p230) target = $region12
      $region11: #{tpu_custom_call.1} parent=5 // pred_region
        %s234 = ssub.s32 %s26, 1
        // Predicated region
        $region13: #{tpu_custom_call.1} parent=11 // pred_check
          %p235 = pneg %p59
        $region14: #{tpu_custom_call.1} parent=11 // pred_check_branch
          %237 = sbr.rel (%p235) target = $region16
        $region15: #{tpu_custom_call.1} parent=11 // pred_region
          %239 = vsyncadd [#allocation5], 0
          %s241 = sshll.u32 %s0, 4
          %s242 = int_to_ptr.hbm [resolvable:$true] %s241
          %244 = dma.hbm_to_smem %s242, 16, [#allocation2], [#allocation5]
        $region16: #{tpu_custom_call.1} parent=11 // pred_fallthru
          _
        // Predicated region
        $region17: #{tpu_custom_call.1} parent=11 // pred_check
          %p245 = pneg %p80
        $region18: #{tpu_custom_call.1} parent=11 // pred_check_branch
          %247 = sbr.rel (%p245) target = $region20
        $region19: #{tpu_custom_call.1} parent=11 // pred_region
          %249 = vsyncadd [#allocation7], 0
          %s251 = sshll.u32 %s1, 4
          %s252 = int_to_ptr.hbm [resolvable:$true] %s251
          %254 = dma.hbm_to_smem %s252, 16, [#allocation6], [#allocation7]
        $region20: #{tpu_custom_call.1} parent=11 // pred_fallthru
          _
      $region12: #{tpu_custom_call.1} parent=5 // pred_fallthru
        _
      %p255 = scmp.lt.s32.totalorder %s26, 2
      // Predicated region
      $region21: #{tpu_custom_call.1} parent=5 // pred_check
        %p256 = pneg %p255
      $region22: #{tpu_custom_call.1} parent=5 // pred_check_branch
        %258 = sbr.rel (%p256) target = $region24
      $region23: #{tpu_custom_call.1} parent=5 // pred_region
        // Predicated region
        $region25: #{tpu_custom_call.1} parent=23 // pred_check
          %p259 = pneg %p102
        $region26: #{tpu_custom_call.1} parent=23 // pred_check_branch
          %261 = sbr.rel (%p259) target = $region28
        $region27: #{tpu_custom_call.1} parent=23 // pred_region
          %s262 = sand.u32 %s92, 1
          %s263 = scalar_lea.sflag [#allocation3], %s262
          %s264 = sand.u32 %s92, 1
          %s265 = smul.addr %s264, 64
          %s266 = scalar_lea.vmem [#allocation8], %s265
          %s267 = smul.u32 2, %s34
          %269 = vsyncadd %s263, 0
          %s270 = smul.addr %s33, 8
          %s271 = sadd.s32 %s267, %s270
          %s272 = smul.addr %s271, 8
          %s273 = scalar_lea.hbm %s2, %s272
          %s274 = sshll.u32 %s273, 4
          %s275 = int_to_ptr.hbm [resolvable:$true] %s274
          %s276 = sshll.u32 %s266, 4
          %s277 = int_to_ptr.vmem [resolvable:$true] %s276
          %282 = dma.hbm_to_vmem [thread:$0]  %s275, 1024, %s277, %s263, 128, 128, 8
        $region28: #{tpu_custom_call.1} parent=23 // pred_fallthru
          _
        // Predicated region
        $region29: #{tpu_custom_call.1} parent=23 // pred_check
          %p283 = pneg %p130
        $region30: #{tpu_custom_call.1} parent=23 // pred_check_branch
          %285 = sbr.rel (%p283) target = $region32
        $region31: #{tpu_custom_call.1} parent=23 // pred_region
          %s286 = sand.u32 %s26, 1
          %s287 = scalar_lea.sflag [#allocation10], %s286
          %s288 = sand.u32 %s120, 1
          %s289 = smul.addr %s288, 64
          %s290 = scalar_lea.vmem [#allocation9], %s289
          %s291 = smul.u32 2, %s34
          %293 = vsyncadd %s287, 0
          %s294 = smul.addr %s33, 8
          %s295 = sadd.s32 %s291, %s294
          %s296 = smul.addr %s295, 8
          %s297 = scalar_lea.hbm %s3, %s296
          %s298 = sshll.u32 %s297, 4
          %s299 = int_to_ptr.hbm [resolvable:$true] %s298
          %s300 = sshll.u32 %s290, 4
          %s301 = int_to_ptr.vmem [resolvable:$true] %s300
          %306 = dma.hbm_to_vmem [thread:$0]  %s299, 1024, %s301, %s287, 128, 128, 8
        $region32: #{tpu_custom_call.1} parent=23 // pred_fallthru
          _
        // Predicated region
        $region33: #{tpu_custom_call.1} parent=23 // pred_check
          %p307 = pneg %p158
        $region34: #{tpu_custom_call.1} parent=23 // pred_check_branch
          %309 = sbr.rel (%p307) target = $region36
        $region35: #{tpu_custom_call.1} parent=23 // pred_region
          %s310 = sand.u32 %s26, 1
          %s311 = scalar_lea.sflag [#allocation10], %s310
          %s312 = sand.u32 %s148, 1
          %s313 = smul.addr %s312, 64
          %s314 = scalar_lea.vmem [#allocation11], %s313
          %s315 = smul.u32 2, %s34
          %317 = vsyncadd %s311, 0
          %s318 = smul.addr %s33, 8
          %s319 = sadd.s32 %s315, %s318
          %s320 = smul.addr %s319, 8
          %s321 = scalar_lea.hbm %s4, %s320
          %s322 = sshll.u32 %s321, 4
          %s323 = int_to_ptr.hbm [resolvable:$true] %s322
          %s324 = sshll.u32 %s314, 4
          %s325 = int_to_ptr.vmem [resolvable:$true] %s324
          %330 = dma.hbm_to_vmem [thread:$0]  %s323, 1024, %s325, %s311, 128, 128, 8
        $region36: #{tpu_custom_call.1} parent=23 // pred_fallthru
          _
        // Predicated region
        $region37: #{tpu_custom_call.1} parent=23 // pred_check
          %p331 = pneg %p186
        $region38: #{tpu_custom_call.1} parent=23 // pred_check_branch
          %333 = sbr.rel (%p331) target = $region40
        $region39: #{tpu_custom_call.1} parent=23 // pred_region
          %s334 = sand.u32 %s176, 1
          %s335 = scalar_lea.sflag [#allocation13], %s334
          %s336 = sand.u32 %s176, 1
          %s337 = smul.addr %s336, 64
          %s338 = scalar_lea.vmem [#allocation12], %s337
          %s339 = smul.u32 2, %s34
          %341 = vsyncadd %s335, 0
          %s342 = smul.addr %s33, 8
          %s343 = sadd.s32 %s339, %s342
          %s344 = smul.addr %s343, 8
          %s345 = scalar_lea.hbm %s5, %s344
          %s346 = sshll.u32 %s345, 4
          %s347 = int_to_ptr.hbm [resolvable:$true] %s346
          %s348 = sshll.u32 %s338, 4
          %s349 = int_to_ptr.vmem [resolvable:$true] %s348
          %354 = dma.hbm_to_vmem [thread:$0]  %s347, 1024, %s349, %s335, 128, 128, 8
        $region40: #{tpu_custom_call.1} parent=23 // pred_fallthru
          _
      $region24: #{tpu_custom_call.1} parent=5 // pred_fallthru
        _
      %p355 = scmp.le.s32.totalorder 1, %s26
      %p356 = scmp.lt.s32.totalorder %s26, 3
      %p357 = pnand %p355, %p356
      %p358 = pneg %p357
      // Predicated region
      $region41: #{tpu_custom_call.1} parent=5 // pred_check
        _
      $region42: #{tpu_custom_call.1} parent=5 // pred_check_branch
        %360 = sbr.rel (%p357) target = $region44
      $region43: #{tpu_custom_call.1} parent=5 // pred_region
        %s361 = ssub.s32 %s26, 1
        // Predicated region
        $region45: #{tpu_custom_call.1} parent=43 // pred_check
          %p362 = pneg %p59
        $region46: #{tpu_custom_call.1} parent=43 // pred_check_branch
          %364 = sbr.rel (%p362) target = $region48
        $region47: #{tpu_custom_call.1} parent=43 // pred_region
          %366 = dma.done [#allocation5], 16
        $region48: #{tpu_custom_call.1} parent=43 // pred_fallthru
          _
        // Predicated region
        $region49: #{tpu_custom_call.1} parent=43 // pred_check
          %p367 = pneg %p80
        $region50: #{tpu_custom_call.1} parent=43 // pred_check_branch
          %369 = sbr.rel (%p367) target = $region52
        $region51: #{tpu_custom_call.1} parent=43 // pred_region
          %371 = dma.done [#allocation7], 16
        $region52: #{tpu_custom_call.1} parent=43 // pred_fallthru
          _
        %s372 = sand.u32 %s95, 1
        %s373 = scalar_lea.sflag [#allocation3], %s372
        %s374 = sand.u32 %s95, 1
        %s375 = smul.addr %s374, 64
        %s376 = scalar_lea.vmem [#allocation8], %s375
        // Predicated region
        $region53: #{tpu_custom_call.1} parent=43 // pred_check
          %p377 = pneg %p108
        $region54: #{tpu_custom_call.1} parent=43 // pred_check_branch
          %379 = sbr.rel (%p377) target = $region56
        $region55: #{tpu_custom_call.1} parent=43 // pred_region
          %381 = dma.done %s373, 1024
        $region56: #{tpu_custom_call.1} parent=43 // pred_fallthru
          _
        %s382 = sand.u32 %s31, 1
        %s383 = scalar_lea.sflag [#allocation10], %s382
        %s384 = sand.u32 %s123, 1
        %s385 = smul.addr %s384, 64
        %s386 = scalar_lea.vmem [#allocation9], %s385
        // Predicated region
        $region57: #{tpu_custom_call.1} parent=43 // pred_check
          %p387 = pneg %p136
        $region58: #{tpu_custom_call.1} parent=43 // pred_check_branch
          %389 = sbr.rel (%p387) target = $region60
        $region59: #{tpu_custom_call.1} parent=43 // pred_region
          %391 = dma.done %s383, 1024
        $region60: #{tpu_custom_call.1} parent=43 // pred_fallthru
          _
        %s392 = sand.u32 %s31, 1
        %s393 = scalar_lea.sflag [#allocation10], %s392
        %s394 = sand.u32 %s151, 1
        %s395 = smul.addr %s394, 64
        %s396 = scalar_lea.vmem [#allocation11], %s395
        // Predicated region
        $region61: #{tpu_custom_call.1} parent=43 // pred_check
          %p397 = pneg %p164
        $region62: #{tpu_custom_call.1} parent=43 // pred_check_branch
          %399 = sbr.rel (%p397) target = $region64
        $region63: #{tpu_custom_call.1} parent=43 // pred_region
          %401 = dma.done %s393, 1024
        $region64: #{tpu_custom_call.1} parent=43 // pred_fallthru
          _
        %s402 = sand.u32 %s179, 1
        %s403 = scalar_lea.sflag [#allocation13], %s402
        %s404 = sand.u32 %s179, 1
        %s405 = smul.addr %s404, 64
        %s406 = scalar_lea.vmem [#allocation12], %s405
        // Predicated region
        $region65: #{tpu_custom_call.1} parent=43 // pred_check
          %p407 = pneg %p192
        $region66: #{tpu_custom_call.1} parent=43 // pred_check_branch
          %409 = sbr.rel (%p407) target = $region68
        $region67: #{tpu_custom_call.1} parent=43 // pred_region
          %411 = dma.done %s403, 1024
        $region68: #{tpu_custom_call.1} parent=43 // pred_fallthru
          _
        %412 = sfence
        %p413 = pneg %p59
        %p414 = pneg %p56
        %p415 = pneg %p80
        %p416 = pneg %p77
        %s417 = sand.u32 %s95, 1
        %s418 = scalar_lea.sflag [#allocation3], %s417
        %s419 = sand.u32 %s95, 1
        %s420 = smul.addr %s419, 64
        %s421 = scalar_lea.vmem [#allocation8], %s420
        %p422 = pneg %p108
        %p423 = pneg %p105
        %s424 = sand.u32 %s31, 1
        %s425 = scalar_lea.sflag [#allocation10], %s424
        %s426 = sand.u32 %s123, 1
        %s427 = smul.addr %s426, 64
        %s428 = scalar_lea.vmem [#allocation9], %s427
        %p429 = pneg %p136
        %p430 = pneg %p133
        %s431 = sand.u32 %s31, 1
        %s432 = scalar_lea.sflag [#allocation10], %s431
        %s433 = sand.u32 %s151, 1
        %s434 = smul.addr %s433, 64
        %s435 = scalar_lea.vmem [#allocation11], %s434
        %p436 = pneg %p164
        %p437 = pneg %p161
        %s438 = sand.u32 %s179, 1
        %s439 = scalar_lea.sflag [#allocation13], %s438
        %s440 = sand.u32 %s179, 1
        %s441 = smul.addr %s440, 64
        %s442 = scalar_lea.vmem [#allocation12], %s441
        %p443 = pneg %p192
        %p444 = pneg %p189
        %p445 = pneg %p220
        %p446 = pneg %p217
        %s447 = sand.u32 %s207, 1
        %s448 = scalar_lea.sflag [#allocation4], %s447
        %s449 = sand.u32 %s207, 1
        %s450 = smul.addr %s449, 64
        %s451 = scalar_lea.vmem [#allocation14], %s450
        %s452 = smul.u32 2, %s36
        %s453 = smul.u32 2, %s36
        %s454 = smul.u32 2, %s36
        %s455 = smul.u32 2, %s36
        %s456 = smul.u32 2, %s36
        loop: start=0, step=1, limit=2
        $region69: #{tpu_custom_call.1} parent=43 // loop_pre_header
          _
        $region70: #{tpu_custom_call.1} parent=43 // loop_header
          %s458 = sphi 0, %s462
          %p459 = scmp.ge.s32.totalorder %s458, 2
        $region71: #{tpu_custom_call.1} parent=43 // loop_header_branch
          %461 = sbr.rel (%p459) target = $region75
        $region72: #{tpu_custom_call.1} parent=43 // loop_body
          %s463 = smul.u32 %s458, 8
          %s464 = scalar_lea.vmem %s376, %s463 [#allocation8]
          %v465 = vld [vmem:[%s464] sm:$0xff]
          %s466 = sadd.s32 %s463, 16
          %s467 = scalar_lea.vmem %s376, %s466 [#allocation8]
          %v468 = vld [vmem:[%s467] sm:$0xff]
          %s469 = sadd.s32 %s463, 32
          %s470 = scalar_lea.vmem %s376, %s469 [#allocation8]
          %v471 = vld [vmem:[%s470] sm:$0xff]
          %s472 = sadd.s32 %s463, 48
          %s473 = scalar_lea.vmem %s376, %s472 [#allocation8]
          %v474 = vld [vmem:[%s473] sm:$0xff]
          %s475 = scalar_lea.vmem %s386, %s463 [#allocation9]
          %v476 = vld [vmem:[%s475] sm:$0xff]
          %s477 = scalar_lea.vmem %s386, %s466 [#allocation9]
          %v478 = vld [vmem:[%s477] sm:$0xff]
          %s479 = scalar_lea.vmem %s386, %s469 [#allocation9]
          %v480 = vld [vmem:[%s479] sm:$0xff]
          %s481 = scalar_lea.vmem %s386, %s472 [#allocation9]
          %v482 = vld [vmem:[%s481] sm:$0xff]
          %s483 = scalar_lea.vmem %s396, %s463 [#allocation11]
          %v484 = vld [vmem:[%s483] sm:$0xff]
          %s485 = scalar_lea.vmem %s396, %s466 [#allocation11]
          %v486 = vld [vmem:[%s485] sm:$0xff]
          %s487 = scalar_lea.vmem %s396, %s469 [#allocation11]
          %v488 = vld [vmem:[%s487] sm:$0xff]
          %s489 = scalar_lea.vmem %s396, %s472 [#allocation11]
          %v490 = vld [vmem:[%s489] sm:$0xff]
          %s491 = scalar_lea.vmem %s406, %s463 [#allocation12]
          %v492 = vld [vmem:[%s491] sm:$0xff]
          %s493 = scalar_lea.vmem %s406, %s466 [#allocation12]
          %v494 = vld [vmem:[%s493] sm:$0xff]
          %s495 = scalar_lea.vmem %s406, %s469 [#allocation12]
          %v496 = vld [vmem:[%s495] sm:$0xff]
          %s497 = scalar_lea.vmem %s406, %s472 [#allocation12]
          %v498 = vld [vmem:[%s497] sm:$0xff]
          %s499 = sld [smem:[#allocation2]]
          %v500 = vstv %s499
          %v501 = vmul.f32 %v476, %v500
          %s502 = sld [smem:[#allocation6]]
          %v503 = vstv %s502
          %v504 = vadd.f32 %v501, %v503
          %s505 = sld [smem:[#allocation2 + $0x1]]
          %v506 = vstv %s505
          %v507 = vmul.f32 %v478, %v506
          %v508 = vadd.f32 %v504, %v507
          %s509 = sld [smem:[#allocation2 + $0x2]]
          %v510 = vstv %s509
          %v511 = vmul.f32 %v480, %v510
          %v512 = vadd.f32 %v508, %v511
          %s513 = sld [smem:[#allocation2 + $0x3]]
          %v514 = vstv %s513
          %v515 = vmul.f32 %v482, %v514
          %v516 = vadd.f32 %v512, %v515
          %v517 = vmul.f32 %v516, 0.5
          %v518 = vtanh.pop %v517
          %v519 = vmul.f32 %v518, 0.5
          %v520 = vadd.f32 %v519, 0.5
          %s521 = sld [smem:[#allocation2 + $0x10]]
          %v522 = vstv %s521
          %v523 = vmul.f32 %v484, %v522
          %s524 = sld [smem:[#allocation6 + $0x4]]
          %v525 = vstv %s524
          %v526 = vadd.f32 %v523, %v525
          %s527 = sld [smem:[#allocation2 + $0x11]]
          %v528 = vstv %s527
          %v529 = vmul.f32 %v486, %v528
          %v530 = vadd.f32 %v526, %v529
          %s531 = sld [smem:[#allocation2 + $0x12]]
          %v532 = vstv %s531
          %v533 = vmul.f32 %v488, %v532
          %v534 = vadd.f32 %v530, %v533
          %s535 = sld [smem:[#allocation2 + $0x13]]
          %v536 = vstv %s535
          %v537 = vmul.f32 %v490, %v536
          %v538 = vadd.f32 %v534, %v537
          %v539 = vmul.f32 %v538, 0.5
          %v540 = vtanh.pop %v539
          %v541 = vmul.f32 %v540, 0.5
          %v542 = vadd.f32 %v541, 0.5
          %s543 = sld [smem:[#allocation2 + $0x20]]
          %v544 = vstv %s543
          %v545 = vmul.f32 %v492, %v544
          %s546 = sld [smem:[#allocation6 + $0x8]]
          %v547 = vstv %s546
          %v548 = vadd.f32 %v545, %v547
          %s549 = sld [smem:[#allocation2 + $0x21]]
          %v550 = vstv %s549
          %v551 = vmul.f32 %v494, %v550
          %v552 = vadd.f32 %v548, %v551
          %s553 = sld [smem:[#allocation2 + $0x22]]
          %v554 = vstv %s553
          %v555 = vmul.f32 %v496, %v554
          %v556 = vadd.f32 %v552, %v555
          %s557 = sld [smem:[#allocation2 + $0x23]]
          %v558 = vstv %s557
          %v559 = vmul.f32 %v498, %v558
          %v560 = vadd.f32 %v556, %v559
          %v561 = vmul.f32 %v560, 0.5
          %v562 = vtanh.pop %v561
          %v563 = vmul.f32 %v562, 0.5
          %v564 = vadd.f32 %v563, 0.5
          %s565 = sld [smem:[#allocation2 + $0x30]]
          %v566 = vstv %s565
          %v567 = vmul.f32 %v465, %v566
          %s568 = sld [smem:[#allocation6 + $0xc]]
          %v569 = vstv %s568
          %v570 = vadd.f32 %v567, %v569
          %s571 = sld [smem:[#allocation2 + $0x31]]
          %v572 = vstv %s571
          %v573 = vmul.f32 %v468, %v572
          %v574 = vadd.f32 %v570, %v573
          %s575 = sld [smem:[#allocation2 + $0x32]]
          %v576 = vstv %s575
          %v577 = vmul.f32 %v471, %v576
          %v578 = vadd.f32 %v574, %v577
          %s579 = sld [smem:[#allocation2 + $0x33]]
          %v580 = vstv %s579
          %v581 = vmul.f32 %v474, %v580
          %v582 = vadd.f32 %v578, %v581
          %v583 = vmul.f32 %v582, 0.5
          %v584 = vtanh.pop %v583
          %v585 = vmul.f32 %v584, 0.5
          %v586 = vadd.f32 %v585, 0.5
          %v587 = vmul.f32 %v476, %v520
          %v588 = vmul.f32 %v484, %v542
          %v589 = vmul.f32 %v492, %v564
          %v590 = vsub.f32 1.0, %v520
          %v591 = vadd.f32 %v588, %v589
          %v592 = vmul.f32 %v590, %v591
          %v593 = vadd.f32 %v587, %v592
          %v594 = vsub.f32 1.0, %v542
          %v595 = vadd.f32 %v587, %v589
          %v596 = vmul.f32 %v594, %v595
          %v597 = vadd.f32 %v588, %v596
          %v598 = vsub.f32 1.0, %v564
          %v599 = vadd.f32 %v588, %v587
          %v600 = vmul.f32 %v598, %v599
          %v601 = vadd.f32 %v589, %v600
          %v602 = vmul.f32 %v465, %v586
          %v603 = vsub.f32 1.0, %v586
          %v604 = vadd.f32 %v593, %v597
          %v605 = vadd.f32 %v604, %v601
          %v606 = vmul.f32 %v603, %v605
          %v607 = vadd.f32 %v602, %v606
          %s608 = scalar_lea.vmem %s451, %s463 [#allocation14]
          %609 = vst [vmem:[%s608] sm:$0xff] %v607
          %s610 = sld [smem:[#allocation2 + $0x4]]
          %v611 = vstv %s610
          %v612 = vmul.f32 %v476, %v611
          %s613 = sld [smem:[#allocation6 + $0x1]]
          %v614 = vstv %s613
          %v615 = vadd.f32 %v612, %v614
          %s616 = sld [smem:[#allocation2 + $0x5]]
          %v617 = vstv %s616
          %v618 = vmul.f32 %v478, %v617
          %v619 = vadd.f32 %v615, %v618
          %s620 = sld [smem:[#allocation2 + $0x6]]
          %v621 = vstv %s620
          %v622 = vmul.f32 %v480, %v621
          %v623 = vadd.f32 %v619, %v622
          %s624 = sld [smem:[#allocation2 + $0x7]]
          %v625 = vstv %s624
          %v626 = vmul.f32 %v482, %v625
          %v627 = vadd.f32 %v623, %v626
          %v628 = vmul.f32 %v627, 0.5
          %v629 = vtanh.pop %v628
          %v630 = vmul.f32 %v629, 0.5
          %v631 = vadd.f32 %v630, 0.5
          %s632 = sld [smem:[#allocation2 + $0x14]]
          %v633 = vstv %s632
          %v634 = vmul.f32 %v484, %v633
          %s635 = sld [smem:[#allocation6 + $0x5]]
          %v636 = vstv %s635
          %v637 = vadd.f32 %v634, %v636
          %s638 = sld [smem:[#allocation2 + $0x15]]
          %v639 = vstv %s638
          %v640 = vmul.f32 %v486, %v639
          %v641 = vadd.f32 %v637, %v640
          %s642 = sld [smem:[#allocation2 + $0x16]]
          %v643 = vstv %s642
          %v644 = vmul.f32 %v488, %v643
          %v645 = vadd.f32 %v641, %v644
          %s646 = sld [smem:[#allocation2 + $0x17]]
          %v647 = vstv %s646
          %v648 = vmul.f32 %v490, %v647
          %v649 = vadd.f32 %v645, %v648
          %v650 = vmul.f32 %v649, 0.5
          %v651 = vtanh.pop %v650
          %v652 = vmul.f32 %v651, 0.5
          %v653 = vadd.f32 %v652, 0.5
          %s654 = sld [smem:[#allocation2 + $0x24]]
          %v655 = vstv %s654
          %v656 = vmul.f32 %v492, %v655
          %s657 = sld [smem:[#allocation6 + $0x9]]
          %v658 = vstv %s657
          %v659 = vadd.f32 %v656, %v658
          %s660 = sld [smem:[#allocation2 + $0x25]]
          %v661 = vstv %s660
          %v662 = vmul.f32 %v494, %v661
          %v663 = vadd.f32 %v659, %v662
          %s664 = sld [smem:[#allocation2 + $0x26]]
          %v665 = vstv %s664
          %v666 = vmul.f32 %v496, %v665
          %v667 = vadd.f32 %v663, %v666
          %s668 = sld [smem:[#allocation2 + $0x27]]
          %v669 = vstv %s668
          %v670 = vmul.f32 %v498, %v669
          %v671 = vadd.f32 %v667, %v670
          %v672 = vmul.f32 %v671, 0.5
          %v673 = vtanh.pop %v672
          %v674 = vmul.f32 %v673, 0.5
          %v675 = vadd.f32 %v674, 0.5
          %s676 = sld [smem:[#allocation2 + $0x34]]
          %v677 = vstv %s676
          %v678 = vmul.f32 %v465, %v677
          %s679 = sld [smem:[#allocation6 + $0xd]]
          %v680 = vstv %s679
          %v681 = vadd.f32 %v678, %v680
          %s682 = sld [smem:[#allocation2 + $0x35]]
          %v683 = vstv %s682
          %v684 = vmul.f32 %v468, %v683
          %v685 = vadd.f32 %v681, %v684
          %s686 = sld [smem:[#allocation2 + $0x36]]
          %v687 = vstv %s686
          %v688 = vmul.f32 %v471, %v687
          %v689 = vadd.f32 %v685, %v688
          %s690 = sld [smem:[#allocation2 + $0x37]]
          %v691 = vstv %s690
          %v692 = vmul.f32 %v474, %v691
          %v693 = vadd.f32 %v689, %v692
          %v694 = vmul.f32 %v693, 0.5
          %v695 = vtanh.pop %v694
          %v696 = vmul.f32 %v695, 0.5
          %v697 = vadd.f32 %v696, 0.5
          %v698 = vmul.f32 %v478, %v631
          %v699 = vmul.f32 %v486, %v653
          %v700 = vmul.f32 %v494, %v675
          %v701 = vsub.f32 1.0, %v631
          %v702 = vadd.f32 %v699, %v700
          %v703 = vmul.f32 %v701, %v702
          %v704 = vadd.f32 %v698, %v703
          %v705 = vsub.f32 1.0, %v653
          %v706 = vadd.f32 %v698, %v700
          %v707 = vmul.f32 %v705, %v706
          %v708 = vadd.f32 %v699, %v707
          %v709 = vsub.f32 1.0, %v675
          %v710 = vadd.f32 %v699, %v698
          %v711 = vmul.f32 %v709, %v710
          %v712 = vadd.f32 %v700, %v711
          %v713 = vmul.f32 %v468, %v697
          %v714 = vsub.f32 1.0, %v697
          %v715 = vadd.f32 %v704, %v708
          %v716 = vadd.f32 %v715, %v712
          %v717 = vmul.f32 %v714, %v716
          %v718 = vadd.f32 %v713, %v717
          %s719 = scalar_lea.vmem %s451, %s466 [#allocation14]
          %720 = vst [vmem:[%s719] sm:$0xff] %v718
          %s721 = sld [smem:[#allocation2 + $0x8]]
          %v722 = vstv %s721
          %v723 = vmul.f32 %v476, %v722
          %s724 = sld [smem:[#allocation6 + $0x2]]
          %v725 = vstv %s724
          %v726 = vadd.f32 %v723, %v725
          %s727 = sld [smem:[#allocation2 + $0x9]]
          %v728 = vstv %s727
          %v729 = vmul.f32 %v478, %v728
          %v730 = vadd.f32 %v726, %v729
          %s731 = sld [smem:[#allocation2 + $0xa]]
          %v732 = vstv %s731
          %v733 = vmul.f32 %v480, %v732
          %v734 = vadd.f32 %v730, %v733
          %s735 = sld [smem:[#allocation2 + $0xb]]
          %v736 = vstv %s735
          %v737 = vmul.f32 %v482, %v736
          %v738 = vadd.f32 %v734, %v737
          %v739 = vmul.f32 %v738, 0.5
          %v740 = vtanh.pop %v739
          %v741 = vmul.f32 %v740, 0.5
          %v742 = vadd.f32 %v741, 0.5
          %s743 = sld [smem:[#allocation2 + $0x18]]
          %v744 = vstv %s743
          %v745 = vmul.f32 %v484, %v744
          %s746 = sld [smem:[#allocation6 + $0x6]]
          %v747 = vstv %s746
          %v748 = vadd.f32 %v745, %v747
          %s749 = sld [smem:[#allocation2 + $0x19]]
          %v750 = vstv %s749
          %v751 = vmul.f32 %v486, %v750
          %v752 = vadd.f32 %v748, %v751
          %s753 = sld [smem:[#allocation2 + $0x1a]]
          %v754 = vstv %s753
          %v755 = vmul.f32 %v488, %v754
          %v756 = vadd.f32 %v752, %v755
          %s757 = sld [smem:[#allocation2 + $0x1b]]
          %v758 = vstv %s757
          %v759 = vmul.f32 %v490, %v758
          %v760 = vadd.f32 %v756, %v759
          %v761 = vmul.f32 %v760, 0.5
          %v762 = vtanh.pop %v761
          %v763 = vmul.f32 %v762, 0.5
          %v764 = vadd.f32 %v763, 0.5
          %s765 = sld [smem:[#allocation2 + $0x28]]
          %v766 = vstv %s765
          %v767 = vmul.f32 %v492, %v766
          %s768 = sld [smem:[#allocation6 + $0xa]]
          %v769 = vstv %s768
          %v770 = vadd.f32 %v767, %v769
          %s771 = sld [smem:[#allocation2 + $0x29]]
          %v772 = vstv %s771
          %v773 = vmul.f32 %v494, %v772
          %v774 = vadd.f32 %v770, %v773
          %s775 = sld [smem:[#allocation2 + $0x2a]]
          %v776 = vstv %s775
          %v777 = vmul.f32 %v496, %v776
          %v778 = vadd.f32 %v774, %v777
          %s779 = sld [smem:[#allocation2 + $0x2b]]
          %v780 = vstv %s779
          %v781 = vmul.f32 %v498, %v780
          %v782 = vadd.f32 %v778, %v781
          %v783 = vmul.f32 %v782, 0.5
          %v784 = vtanh.pop %v783
          %v785 = vmul.f32 %v784, 0.5
          %v786 = vadd.f32 %v785, 0.5
          %s787 = sld [smem:[#allocation2 + $0x38]]
          %v788 = vstv %s787
          %v789 = vmul.f32 %v465, %v788
          %s790 = sld [smem:[#allocation6 + $0xe]]
          %v791 = vstv %s790
          %v792 = vadd.f32 %v789, %v791
          %s793 = sld [smem:[#allocation2 + $0x39]]
          %v794 = vstv %s793
          %v795 = vmul.f32 %v468, %v794
          %v796 = vadd.f32 %v792, %v795
          %s797 = sld [smem:[#allocation2 + $0x3a]]
          %v798 = vstv %s797
          %v799 = vmul.f32 %v471, %v798
          %v800 = vadd.f32 %v796, %v799
          %s801 = sld [smem:[#allocation2 + $0x3b]]
          %v802 = vstv %s801
          %v803 = vmul.f32 %v474, %v802
          %v804 = vadd.f32 %v800, %v803
          %v805 = vmul.f32 %v804, 0.5
          %v806 = vtanh.pop %v805
          %v807 = vmul.f32 %v806, 0.5
          %v808 = vadd.f32 %v807, 0.5
          %v809 = vmul.f32 %v480, %v742
          %v810 = vmul.f32 %v488, %v764
          %v811 = vmul.f32 %v496, %v786
          %v812 = vsub.f32 1.0, %v742
          %v813 = vadd.f32 %v810, %v811
          %v814 = vmul.f32 %v812, %v813
          %v815 = vadd.f32 %v809, %v814
          %v816 = vsub.f32 1.0, %v764
          %v817 = vadd.f32 %v809, %v811
          %v818 = vmul.f32 %v816, %v817
          %v819 = vadd.f32 %v810, %v818
          %v820 = vsub.f32 1.0, %v786
          %v821 = vadd.f32 %v810, %v809
          %v822 = vmul.f32 %v820, %v821
          %v823 = vadd.f32 %v811, %v822
          %v824 = vmul.f32 %v471, %v808
          %v825 = vsub.f32 1.0, %v808
          %v826 = vadd.f32 %v815, %v819
          %v827 = vadd.f32 %v826, %v823
          %v828 = vmul.f32 %v825, %v827
          %v829 = vadd.f32 %v824, %v828
          %s830 = scalar_lea.vmem %s451, %s469 [#allocation14]
          %831 = vst [vmem:[%s830] sm:$0xff] %v829
          %s832 = sld [smem:[#allocation2 + $0xc]]
          %v833 = vstv %s832
          %v834 = vmul.f32 %v476, %v833
          %s835 = sld [smem:[#allocation6 + $0x3]]
          %v836 = vstv %s835
          %v837 = vadd.f32 %v834, %v836
          %s838 = sld [smem:[#allocation2 + $0xd]]
          %v839 = vstv %s838
          %v840 = vmul.f32 %v478, %v839
          %v841 = vadd.f32 %v837, %v840
          %s842 = sld [smem:[#allocation2 + $0xe]]
          %v843 = vstv %s842
          %v844 = vmul.f32 %v480, %v843
          %v845 = vadd.f32 %v841, %v844
          %s846 = sld [smem:[#allocation2 + $0xf]]
          %v847 = vstv %s846
          %v848 = vmul.f32 %v482, %v847
          %v849 = vadd.f32 %v845, %v848
          %v850 = vmul.f32 %v849, 0.5
          %v851 = vtanh.pop %v850
          %v852 = vmul.f32 %v851, 0.5
          %v853 = vadd.f32 %v852, 0.5
          %s854 = sld [smem:[#allocation2 + $0x1c]]
          %v855 = vstv %s854
          %v856 = vmul.f32 %v484, %v855
          %s857 = sld [smem:[#allocation6 + $0x7]]
          %v858 = vstv %s857
          %v859 = vadd.f32 %v856, %v858
          %s860 = sld [smem:[#allocation2 + $0x1d]]
          %v861 = vstv %s860
          %v862 = vmul.f32 %v486, %v861
          %v863 = vadd.f32 %v859, %v862
          %s864 = sld [smem:[#allocation2 + $0x1e]]
          %v865 = vstv %s864
          %v866 = vmul.f32 %v488, %v865
          %v867 = vadd.f32 %v863, %v866
          %s868 = sld [smem:[#allocation2 + $0x1f]]
          %v869 = vstv %s868
          %v870 = vmul.f32 %v490, %v869
          %v871 = vadd.f32 %v867, %v870
          %v872 = vmul.f32 %v871, 0.5
          %v873 = vtanh.pop %v872
          %v874 = vmul.f32 %v873, 0.5
          %v875 = vadd.f32 %v874, 0.5
          %s876 = sld [smem:[#allocation2 + $0x2c]]
          %v877 = vstv %s876
          %v878 = vmul.f32 %v492, %v877
          %s879 = sld [smem:[#allocation6 + $0xb]]
          %v880 = vstv %s879
          %v881 = vadd.f32 %v878, %v880
          %s882 = sld [smem:[#allocation2 + $0x2d]]
          %v883 = vstv %s882
          %v884 = vmul.f32 %v494, %v883
          %v885 = vadd.f32 %v881, %v884
          %s886 = sld [smem:[#allocation2 + $0x2e]]
          %v887 = vstv %s886
          %v888 = vmul.f32 %v496, %v887
          %v889 = vadd.f32 %v885, %v888
          %s890 = sld [smem:[#allocation2 + $0x2f]]
          %v891 = vstv %s890
          %v892 = vmul.f32 %v498, %v891
          %v893 = vadd.f32 %v889, %v892
          %v894 = vmul.f32 %v893, 0.5
          %v895 = vtanh.pop %v894
          %v896 = vmul.f32 %v895, 0.5
          %v897 = vadd.f32 %v896, 0.5
          %s898 = sld [smem:[#allocation2 + $0x3c]]
          %v899 = vstv %s898
          %v900 = vmul.f32 %v465, %v899
          %s901 = sld [smem:[#allocation6 + $0xf]]
          %v902 = vstv %s901
          %v903 = vadd.f32 %v900, %v902
          %s904 = sld [smem:[#allocation2 + $0x3d]]
          %v905 = vstv %s904
          %v906 = vmul.f32 %v468, %v905
          %v907 = vadd.f32 %v903, %v906
          %s908 = sld [smem:[#allocation2 + $0x3e]]
          %v909 = vstv %s908
          %v910 = vmul.f32 %v471, %v909
          %v911 = vadd.f32 %v907, %v910
          %s912 = sld [smem:[#allocation2 + $0x3f]]
          %v913 = vstv %s912
          %v914 = vmul.f32 %v474, %v913
          %v915 = vadd.f32 %v911, %v914
          %v916 = vmul.f32 %v915, 0.5
          %v917 = vtanh.pop %v916
          %v918 = vmul.f32 %v917, 0.5
          %v919 = vadd.f32 %v918, 0.5
          %v920 = vmul.f32 %v482, %v853
          %v921 = vmul.f32 %v490, %v875
          %v922 = vmul.f32 %v498, %v897
          %v923 = vsub.f32 1.0, %v853
          %v924 = vadd.f32 %v921, %v922
          %v925 = vmul.f32 %v923, %v924
          %v926 = vadd.f32 %v920, %v925
          %v927 = vsub.f32 1.0, %v875
          %v928 = vadd.f32 %v920, %v922
          %v929 = vmul.f32 %v927, %v928
          %v930 = vadd.f32 %v921, %v929
          %v931 = vsub.f32 1.0, %v897
          %v932 = vadd.f32 %v921, %v920
          %v933 = vmul.f32 %v931, %v932
          %v934 = vadd.f32 %v922, %v933
          %v935 = vmul.f32 %v474, %v919
          %v936 = vsub.f32 1.0, %v919
          %v937 = vadd.f32 %v926, %v930
          %v938 = vadd.f32 %v937, %v934
          %v939 = vmul.f32 %v936, %v938
          %v940 = vadd.f32 %v935, %v939
          %s941 = scalar_lea.vmem %s451, %s472 [#allocation14]
          %942 = vst [vmem:[%s941] sm:$0xff] %v940
        $region73: #{tpu_custom_call.1} parent=43 // loop_footer
          %s462 = sadd.s32 1, %s458
        $region74: #{tpu_custom_call.1} parent=43 // loop_footer_branch
          %457 = sbr.rel target = $region70
        $region75: #{tpu_custom_call.1} parent=43 // loop_exit
          _
        %s943 = sand.u32 %s207, 1
        %s944 = scalar_lea.sflag [#allocation4], %s943
        %s945 = sand.u32 %s207, 1
        %s946 = smul.addr %s945, 64
        %s947 = scalar_lea.vmem [#allocation14], %s946
        // Predicated region
        $region76: #{tpu_custom_call.1} parent=43 // pred_check
          %p948 = pneg %p217
        $region77: #{tpu_custom_call.1} parent=43 // pred_check_branch
          %950 = sbr.rel (%p948) target = $region79
        $region78: #{tpu_custom_call.1} parent=43 // pred_region
          %s951 = smul.u32 2, %s36
          %953 = vsyncadd %s944, 0
          %s954 = smul.addr %s35, 8
          %s955 = sadd.s32 %s951, %s954
          %s956 = smul.addr %s955, 8
          %s957 = scalar_lea.hbm %s6, %s956
          %s958 = sshll.u32 %s947, 4
          %s959 = int_to_ptr.vmem [resolvable:$true] %s958
          %s960 = sshll.u32 %s957, 4
          %s961 = int_to_ptr.hbm [resolvable:$true] %s960
          %966 = dma.vmem_to_hbm [thread:$0]  %s959, 1024, %s961, %s944, 128, 128, 8
        $region79: #{tpu_custom_call.1} parent=43 // pred_fallthru
          _
      $region44: #{tpu_custom_call.1} parent=5 // pred_fallthru
        _
      %p967 = scmp.le.s32.totalorder 2, %s26
      // Predicated region
      $region80: #{tpu_custom_call.1} parent=5 // pred_check
        %p968 = pneg %p967
      $region81: #{tpu_custom_call.1} parent=5 // pred_check_branch
        %970 = sbr.rel (%p968) target = $region83
      $region82: #{tpu_custom_call.1} parent=5 // pred_region
        %s971 = ssub.s32 %s26, 2
        // Predicated region
        $region84: #{tpu_custom_call.1} parent=82 // pred_check
          %p972 = pneg %p223
        $region85: #{tpu_custom_call.1} parent=82 // pred_check_branch
          %974 = sbr.rel (%p972) target = $region87
        $region86: #{tpu_custom_call.1} parent=82 // pred_region
          %s975 = sand.u32 %s208, 1
          %s976 = scalar_lea.sflag [#allocation4], %s975
          %s977 = sand.u32 %s208, 1
          %s978 = smul.addr %s977, 64
          %s979 = scalar_lea.vmem [#allocation14], %s978
          %981 = dma.done %s976, 1024
        $region87: #{tpu_custom_call.1} parent=82 // pred_fallthru
          _
      $region83: #{tpu_custom_call.1} parent=5 // pred_fallthru
        _
    $region6: #{tpu_custom_call.1} parent=1 // loop_footer
      %s30 = sadd.s32 1, %s26
    $region7: #{tpu_custom_call.1} parent=1 // loop_footer_branch
      %25 = sbr.rel target = $region3
    $region8: #{tpu_custom_call.1} parent=1 // loop_exit
      _
    %982 = vsyncpa [#allocation3], 1
    %s983 = scalar_lea.sflag [#allocation3], 1
    %984 = vsyncpa %s983, 1
    %985 = vsyncpa [#allocation10], 1
    %s986 = scalar_lea.sflag [#allocation10], 1
    %987 = vsyncpa %s986, 1
    %988 = vsyncpa [#allocation13], 1
    %s989 = scalar_lea.sflag [#allocation13], 1
    %990 = vsyncpa %s989, 1
    %991 = vsyncpa [#allocation4], 1
    %s992 = scalar_lea.sflag [#allocation4], 1
    %993 = vsyncpa %s992, 1
    %994 = vsyncpa [#allocation5], 1
    %s995 = scalar_lea.sflag [#allocation5], 1
    %996 = vsyncpa %s995, 1
    %997 = vsyncpa [#allocation7], 1

</llo_original>
